<compile_context>
chip_gen: v6e
topology: v6e:2x2x1
jax: 0.10.0
libtpu: 0.0.40
codegen_flags: <defaults>
</compile_context>

<pallas_src>
import functools

import jax
import jax.numpy as jnp
import numpy as np
from jax.experimental import pallas as pl
from jax.experimental.pallas import tpu as pltpu


def _round_up(x, m):
    return ((x + m - 1) // m) * m


# ----------------------------- Pallas kernel ------------------------------ #
def _backbone_kernel(patches_ref, cw_ref, cb_ref, pool_ref, dw_ref, db_ref, o_ref):
    """One batch tile (B_TILE images) per grid step.

    patches_ref : (B_TILE*H*W, 9*C_in)  im2col rows (built in the wrapper)
    cw_ref      : (9*C_in, C_pad)       flattened conv weights, zero-padded channels
    cb_ref      : (1, C_pad)            conv bias (zero-padded)
    pool_ref    : (B_TILE, B_TILE*H*W)  block-diagonal average-pool matrix (1/(H*W))
    dw_ref      : (C_pad, D_pad)        dense weights (zero-padded)
    db_ref      : (1, D_pad)            dense bias (zero-padded)
    o_ref       : (B_TILE, D_pad)       output features (lane-dense slab)
    """
    # 3x3 conv over the whole tile as a single im2col matmul on the MXU.
    conv = jnp.dot(patches_ref[...], cw_ref[...], preferred_element_type=jnp.float32)
    conv = jnp.maximum(conv + cb_ref[...], 0.0)  # bias + ReLU, lane-dense (C_pad = k*128)

    # Global average pool as an MXU reduction (block-diagonal 1/(H*W) matrix)
    # instead of a cross-sublane XLU mean.
    pooled = jnp.dot(pool_ref[...], conv, preferred_element_type=jnp.float32)

    # Dense head; padded channel rows / output cols are zero, so padding is inert.
    feat = jnp.dot(pooled, dw_ref[...], preferred_element_type=jnp.float32) + db_ref[...]

    # Dropout(drop_rate=0.0) is the identity in forward.
    o_ref[...] = feat.astype(o_ref.dtype)


# ------------------------------ JAX wrapper -------------------------------- #
def timm_model_forward(batch, params, *, image_field="img", batch_tile=8):
    """Replicates TimmModel.forward(batch) -> (N, dense_layer_dim) features."""
    x_nchw = batch[image_field]                       # (N, C, H, W)  -- PyTorch layout
    N, C_in, H, W = x_nchw.shape
    HW = H * W
    K = 9 * C_in

    conv_w, conv_b, dense_w, dense_b = (
        params["conv_w"], params["conv_b"], params["dense_w"], params["dense_b"]
    )
    C_conv = conv_w.shape[-1]
    D = dense_w.shape[-1]

    # Tile the batch; pad N so the output block is (8k, 128m)-tiled (no masked stores).
    B_TILE = min(batch_tile, _round_up(N, 8))
    N_pad = _round_up(N, B_TILE)
    C_pad = _round_up(C_conv, 128)
    D_pad = _round_up(D, 128)

    # NCHW -> NHWC, pad batch, zero-pad spatial dims for the 3x3 "same" conv.
    x = jnp.transpose(x_nchw, (0, 2, 3, 1)).astype(jnp.float32)
    x = jnp.pad(x, ((0, N_pad - N), (1, 1), (1, 1), (0, 0)))

    # im2col in the wrapper: (N_pad*H*W, 9*C_in), ordered (dh, dw, c_in) to match
    # conv_w.reshape(9*C_in, C_conv).
    patches = jnp.stack(
        [x[:, dh:dh + H, dw:dw + W, :] for dh in range(3) for dw in range(3)], axis=3
    ).reshape(N_pad * HW, K)

    # Flatten / zero-pad weights and biases to lane-dense (multiple-of-128) widths.
    cw = jnp.zeros((K, C_pad), jnp.float32).at[:, :C_conv].set(
        conv_w.reshape(K, C_conv).astype(jnp.float32))
    cb = jnp.zeros((1, C_pad), jnp.float32).at[0, :C_conv].set(conv_b.astype(jnp.float32))
    dw = jnp.zeros((C_pad, D_pad), jnp.float32).at[:C_conv, :D].set(
        dense_w.astype(jnp.float32))
    db = jnp.zeros((1, D_pad), jnp.float32).at[0, :D].set(dense_b.astype(jnp.float32))

    # Block-diagonal GAP matrix: row b has 1/(H*W) over that image's H*W rows.
    rows = jnp.arange(B_TILE, dtype=jnp.int32)[:, None]
    cols = jnp.arange(B_TILE * HW, dtype=jnp.int32)[None, :]
    pool = jnp.where(cols // HW == rows, 1.0 / HW, 0.0).astype(jnp.float32)

    # TODO(synk): real timm backbones are deep stacks of blocks; a deeper version
    # would add a reduction grid axis with a VMEM scratch accumulator (@pl.when
    # init/finalize) — not needed for this single conv->ReLU->GAP->dense head.
    out = pl.pallas_call(
        _backbone_kernel,
        out_shape=jax.ShapeDtypeStruct((N_pad, D_pad), jnp.float32),
        grid_spec=pltpu.PrefetchScalarGridSpec(
            num_scalar_prefetch=0,
            grid=(N_pad // B_TILE,),
            in_specs=[
                pl.BlockSpec((B_TILE * HW, K), lambda n: (n, 0)),
                pl.BlockSpec((K, C_pad), lambda n: (0, 0)),
                pl.BlockSpec((1, C_pad), lambda n: (0, 0)),
                pl.BlockSpec((B_TILE, B_TILE * HW), lambda n: (0, 0)),
                pl.BlockSpec((C_pad, D_pad), lambda n: (0, 0)),
                pl.BlockSpec((1, D_pad), lambda n: (0, 0)),
            ],
            out_specs=pl.BlockSpec((B_TILE, D_pad), lambda n: (n, 0)),
        ),
        compiler_params=pltpu.CompilerParams(
            # Batch-tile axis is independent -> megacore-shardable on v7x.
            dimension_semantics=("parallel",),
        ),
    )(patches, cw, cb, pool, dw, db)

    return out[:N, :D]


# --------------------------- reference (pure JAX) --------------------------- #
def _reference_forward(batch, params, *, image_field="img"):
    x = jnp.transpose(batch[image_field], (0, 2, 3, 1)).astype(jnp.float32)  # NHWC
    y = jax.lax.conv_general_dilated(
        x, params["conv_w"].astype(jnp.float32),
        window_strides=(1, 1), padding="SAME",
        dimension_numbers=("NHWC", "HWIO", "NHWC"),
    ) + params["conv_b"][None, None, None, :]
    y = jnp.maximum(y, 0.0)
    pooled = jnp.mean(y, axis=(1, 2))                                        # (N, C_conv)
    return pooled @ params["dense_w"] + params["dense_b"][None, :]


# ---------------------------------- main ----------------------------------- #
if __name__ == "__main__":
    key = jax.random.PRNGKey(0)
    k_img, k_cw, k_cb, k_dw, k_db = jax.random.split(key, 5)

    # Small shapes consistent with an image-model forward.
    N, C_in, H, W = 2, 4, 16, 16
    C_conv = 32          # backbone feature width
    dense_layer_dim = 32 # TimmModel(dense_layer_dim=32)

    batch = {"img": jax.random.normal(k_img, (N, C_in, H, W), dtype=jnp.float32)}

    params = {
        "conv_w": jax.random.normal(k_cw, (3, 3, C_in, C_conv), dtype=jnp.float32) * 0.1,
        "conv_b": jax.random.normal(k_cb, (C_conv,), dtype=jnp.float32) * 0.1,
        "dense_w": jax.random.normal(k_dw, (C_conv, dense_layer_dim), dtype=jnp.float32) * 0.1,
        "dense_b": jax.random.normal(k_db, (dense_layer_dim,), dtype=jnp.float32) * 0.1,
    }

    out = jax.block_until_ready(timm_model_forward(batch, params))
    ref = jax.block_until_ready(_reference_forward(batch, params))
    np.testing.assert_allclose(np.asarray(out), np.asarray(ref), rtol=1e-4, atol=1e-4)

    print("KERNEL_OK")
</pallas_src>

<mosaic_0001>
module attributes {stable_mosaic.version = 11 : i64} {
  func.func @_backbone_kernel(%arg0: i32, %arg1: memref<2048x36xf32, #tpu.memory_space<vmem>>, %arg2: memref<36x128xf32, #tpu.memory_space<vmem>>, %arg3: memref<1x128xf32, #tpu.memory_space<vmem>>, %arg4: memref<8x2048xf32, #tpu.memory_space<vmem>>, %arg5: memref<128x128xf32, #tpu.memory_space<vmem>>, %arg6: memref<1x128xf32, #tpu.memory_space<vmem>>, %arg7: memref<8x128xf32, #tpu.memory_space<vmem>>) attributes {dimension_semantics = [#tpu.dimension_semantics<parallel>], iteration_bounds = array<i64: 1>, scalar_prefetch = 0 : i64, scratch_operands = 0 : i64, tpu.core_type = #tpu.core_type<tc>, window_params = [{transform_indices = @transform_0, window_bounds = array<i64: 2048, 36>}, {pipeline_mode = #tpu.pipeline_mode<synchronous>, transform_indices = @transform_1, window_bounds = array<i64: 36, 128>}, {pipeline_mode = #tpu.pipeline_mode<synchronous>, transform_indices = @transform_2, window_bounds = array<i64: 1, 128>}, {pipeline_mode = #tpu.pipeline_mode<synchronous>, transform_indices = @transform_3, window_bounds = array<i64: 8, 2048>}, {pipeline_mode = #tpu.pipeline_mode<synchronous>, transform_indices = @transform_4, window_bounds = array<i64: 128, 128>}, {pipeline_mode = #tpu.pipeline_mode<synchronous>, transform_indices = @transform_5, window_bounds = array<i64: 1, 128>}, {transform_indices = @transform_6, window_bounds = array<i64: 8, 128>}]} {
    %c0 = arith.constant 0 : index
    %c0_0 = arith.constant 0 : index
    %0 = vector.load %arg1[%c0, %c0_0] : memref<2048x36xf32, #tpu.memory_space<vmem>>, vector<2048x36xf32>
    %c0_1 = arith.constant 0 : index
    %c0_2 = arith.constant 0 : index
    %1 = vector.load %arg2[%c0_1, %c0_2] : memref<36x128xf32, #tpu.memory_space<vmem>>, vector<36x128xf32>
    %cst = arith.constant dense<0.000000e+00> : vector<2048x128xf32>
    %2 = tpu.matmul %0, %1, %cst {dimension_numbers = #tpu.dot_dimension_numbers<[1], [0], [0], [1], [0, 0, 1, 1], [], []>} : vector<2048x36xf32>, vector<36x128xf32>, vector<2048x128xf32> -> vector<2048x128xf32>
    %c0_3 = arith.constant 0 : index
    %c0_4 = arith.constant 0 : index
    %3 = vector.load %arg3[%c0_3, %c0_4] : memref<1x128xf32, #tpu.memory_space<vmem>>, vector<1x128xf32>
    %4 = vector.broadcast %3 : vector<1x128xf32> to vector<2048x128xf32>
    %5 = arith.addf %2, %4 : vector<2048x128xf32>
    %cst_5 = arith.constant 0.000000e+00 : f32
    %6 = vector.broadcast %cst_5 : f32 to vector<2048x128xf32>
    %7 = arith.maximumf %5, %6 : vector<2048x128xf32>
    %c0_6 = arith.constant 0 : index
    %c0_7 = arith.constant 0 : index
    %8 = vector.load %arg4[%c0_6, %c0_7] : memref<8x2048xf32, #tpu.memory_space<vmem>>, vector<8x2048xf32>
    %cst_8 = arith.constant dense<0.000000e+00> : vector<8x128xf32>
    %9 = tpu.matmul %8, %7, %cst_8 {dimension_numbers = #tpu.dot_dimension_numbers<[1], [0], [0], [1], [0, 0, 1, 1], [], []>} : vector<8x2048xf32>, vector<2048x128xf32>, vector<8x128xf32> -> vector<8x128xf32>
    %c0_9 = arith.constant 0 : index
    %c0_10 = arith.constant 0 : index
    %10 = vector.load %arg5[%c0_9, %c0_10] : memref<128x128xf32, #tpu.memory_space<vmem>>, vector<128x128xf32>
    %cst_11 = arith.constant dense<0.000000e+00> : vector<8x128xf32>
    %11 = tpu.matmul %9, %10, %cst_11 {dimension_numbers = #tpu.dot_dimension_numbers<[1], [0], [0], [1], [0, 0, 1, 1], [], []>} : vector<8x128xf32>, vector<128x128xf32>, vector<8x128xf32> -> vector<8x128xf32>
    %c0_12 = arith.constant 0 : index
    %c0_13 = arith.constant 0 : index
    %12 = vector.load %arg6[%c0_12, %c0_13] : memref<1x128xf32, #tpu.memory_space<vmem>>, vector<1x128xf32>
    %13 = vector.broadcast %12 : vector<1x128xf32> to vector<8x128xf32>
    %14 = arith.addf %11, %13 : vector<8x128xf32>
    %c0_14 = arith.constant 0 : index
    %c0_15 = arith.constant 0 : index
    %15 = vector.load %arg7[%c0_14, %c0_15] : memref<8x128xf32, #tpu.memory_space<vmem>>, vector<8x128xf32>
    tpu.vector_store %arg7[%c0_14, %c0_15], %14 {strides = array<i32>} : memref<8x128xf32, #tpu.memory_space<vmem>>, vector<8x128xf32>,
    return
  }
  func.func @transform_0(%arg0: i32) -> (i32, i32) {
    %c0_i32 = arith.constant 0 : i32
    %c0_i32_0 = arith.constant 0 : i32
    return %arg0, %c0_i32 : i32, i32
  }
  func.func @transform_1(%arg0: i32) -> (i32, i32) {
    %c0_i32 = arith.constant 0 : i32
    %c0_i32_0 = arith.constant 0 : i32
    %c0_i32_1 = arith.constant 0 : i32
    return %c0_i32, %c0_i32_0 : i32, i32
  }
  func.func @transform_2(%arg0: i32) -> (i32, i32) {
    %c0_i32 = arith.constant 0 : i32
    %c0_i32_0 = arith.constant 0 : i32
    %c0_i32_1 = arith.constant 0 : i32
    return %c0_i32, %c0_i32_0 : i32, i32
  }
  func.func @transform_3(%arg0: i32) -> (i32, i32) {
    %c0_i32 = arith.constant 0 : i32
    %c0_i32_0 = arith.constant 0 : i32
    %c0_i32_1 = arith.constant 0 : i32
    return %c0_i32, %c0_i32_0 : i32, i32
  }
  func.func @transform_4(%arg0: i32) -> (i32, i32) {
    %c0_i32 = arith.constant 0 : i32
    %c0_i32_0 = arith.constant 0 : i32
    %c0_i32_1 = arith.constant 0 : i32
    return %c0_i32, %c0_i32_0 : i32, i32
  }
  func.func @transform_5(%arg0: i32) -> (i32, i32) {
    %c0_i32 = arith.constant 0 : i32
    %c0_i32_0 = arith.constant 0 : i32
    %c0_i32_1 = arith.constant 0 : i32
    return %c0_i32, %c0_i32_0 : i32, i32
  }
  func.func @transform_6(%arg0: i32) -> (i32, i32) {
    %c0_i32 = arith.constant 0 : i32
    %c0_i32_0 = arith.constant 0 : i32
    return %arg0, %c0_i32 : i32, i32
  }
}

</mosaic_0001>

<llo_original>
// kernel: tpu_custom_call.1
$region0: #{tpu_custom_call.1}
  #allocation0 [shape = 'u32[]', space=smem, size = 0x4, offset = 0x4, fixed_abs, tag = 'smem constant byte address 0x4 - core index']
  #allocation1 [shape = 'u32[144,128]{1,0:T(1,128)}', space=vmem, size = 0x12000, scoped, tag = 'internal scratch']
  %s0 = inlined_call_operand.vmem [shape: f32[2048,36], index: 0, kind: input, shape index: {}]
  %s1 = inlined_call_operand.vmem [shape: f32[36,128], index: 1, kind: input, shape index: {}]
  %s2 = inlined_call_operand.vmem [shape: f32[1,128], index: 2, kind: input, shape index: {}]
  %s3 = inlined_call_operand.vmem [shape: f32[8,2048], index: 3, kind: input, shape index: {}]
  %s4 = inlined_call_operand.vmem [shape: f32[128,128], index: 4, kind: input, shape index: {}]
  %s5 = inlined_call_operand.vmem [shape: f32[1,128], index: 5, kind: input, shape index: {}]
  %s6 = inlined_call_operand.hbm [shape: f32[8,128], index: 6, kind: output, shape index: {}]
  %s7 = sld [smem:[#allocation0]]
  $region34: #{tpu_custom_call.1} parent=0
    _
  %s9 = ssub.s32 1, %s7
  %s10 = scalar_select 0, %s9, %s7
  $region1: #{tpu_custom_call.1} parent=0
    #allocation2 [shape = 'u8[4096]{0}', space=vmem, size = 0x1000, scoped, tag = 'output window, operand 0, single buffered']
    #allocation3 [shape = 's32[1]{0}', space=sflag, size = 0x4, scoped, tag = 'scoped memory for tpu_custom_call.1']
    %11 = vsyncpa [#allocation3], 0
    // Predicated region
    $region2: #{tpu_custom_call.1} parent=1 // pred_check
      _
    $region3: #{tpu_custom_call.1} parent=1 // pred_check_branch
      %13 = sbr.rel (0) target = $region5
    $region4: #{tpu_custom_call.1} parent=1 // pred_region
      _
    $region5: #{tpu_custom_call.1} parent=1 // pred_fallthru
      _
    // Predicated region
    $region6: #{tpu_custom_call.1} parent=1 // pred_check
      _
    $region7: #{tpu_custom_call.1} parent=1 // pred_check_branch
      %15 = sbr.rel (0) target = $region9
    $region8: #{tpu_custom_call.1} parent=1 // pred_region
      _
    $region9: #{tpu_custom_call.1} parent=1 // pred_fallthru
      _
    // Predicated region
    $region10: #{tpu_custom_call.1} parent=1 // pred_check
      _
    $region11: #{tpu_custom_call.1} parent=1 // pred_check_branch
      %17 = sbr.rel (0) target = $region13
    $region12: #{tpu_custom_call.1} parent=1 // pred_region
      _
    $region13: #{tpu_custom_call.1} parent=1 // pred_fallthru
      _
    // Predicated region
    $region14: #{tpu_custom_call.1} parent=1 // pred_check
      _
    $region15: #{tpu_custom_call.1} parent=1 // pred_check_branch
      %19 = sbr.rel (0) target = $region17
    $region16: #{tpu_custom_call.1} parent=1 // pred_region
      _
    $region17: #{tpu_custom_call.1} parent=1 // pred_fallthru
      _
    // Predicated region
    $region18: #{tpu_custom_call.1} parent=1 // pred_check
      _
    $region19: #{tpu_custom_call.1} parent=1 // pred_check_branch
      %21 = sbr.rel (0) target = $region21
    $region20: #{tpu_custom_call.1} parent=1 // pred_region
      _
    $region21: #{tpu_custom_call.1} parent=1 // pred_fallthru
      _
    // Predicated region
    $region22: #{tpu_custom_call.1} parent=1 // pred_check
      _
    $region23: #{tpu_custom_call.1} parent=1 // pred_check_branch
      %23 = sbr.rel (0) target = $region25
    $region24: #{tpu_custom_call.1} parent=1 // pred_region
      _
    $region25: #{tpu_custom_call.1} parent=1 // pred_fallthru
      _
    %v24 = vld [vmem:[%s0] sm:$0xff]
    %v25 = vld [vmem:[%s0 + $0x8] sm:$0xff]
    %v26 = vld [vmem:[%s0 + $0x10] sm:$0xff]
    %v27 = vld [vmem:[%s0 + $0x18] sm:$0xff]
    %v28 = vld [vmem:[%s0 + $0x20] sm:$0xff]
    %v29 = vld [vmem:[%s0 + $0x28] sm:$0xff]
    %v30 = vld [vmem:[%s0 + $0x30] sm:$0xff]
    %v31 = vld [vmem:[%s0 + $0x38] sm:$0xff]
    %v32 = vld [vmem:[%s0 + $0x40] sm:$0xff]
    %v33 = vld [vmem:[%s0 + $0x48] sm:$0xff]
    %v34 = vld [vmem:[%s0 + $0x50] sm:$0xff]
    %v35 = vld [vmem:[%s0 + $0x58] sm:$0xff]
    %v36 = vld [vmem:[%s0 + $0x60] sm:$0xff]
    %v37 = vld [vmem:[%s0 + $0x68] sm:$0xff]
    %v38 = vld [vmem:[%s0 + $0x70] sm:$0xff]
    %v39 = vld [vmem:[%s0 + $0x78] sm:$0xff]
    %v40 = vld [vmem:[%s0 + $0x80] sm:$0xff]
    %v41 = vld [vmem:[%s0 + $0x88] sm:$0xff]
    %v42 = vld [vmem:[%s0 + $0x90] sm:$0xff]
    %v43 = vld [vmem:[%s0 + $0x98] sm:$0xff]
    %v44 = vld [vmem:[%s0 + $0xa0] sm:$0xff]
    %v45 = vld [vmem:[%s0 + $0xa8] sm:$0xff]
    %v46 = vld [vmem:[%s0 + $0xb0] sm:$0xff]
    %v47 = vld [vmem:[%s0 + $0xb8] sm:$0xff]
    %v48 = vld [vmem:[%s0 + $0xc0] sm:$0xff]
    %v49 = vld [vmem:[%s0 + $0xc8] sm:$0xff]
    %v50 = vld [vmem:[%s0 + $0xd0] sm:$0xff]
    %v51 = vld [vmem:[%s0 + $0xd8] sm:$0xff]
    %v52 = vld [vmem:[%s0 + $0xe0] sm:$0xff]
    %v53 = vld [vmem:[%s0 + $0xe8] sm:$0xff]
    %v54 = vld [vmem:[%s0 + $0xf0] sm:$0xff]
    %v55 = vld [vmem:[%s0 + $0xf8] sm:$0xff]
    %v56 = vld [vmem:[%s0 + $0x100] sm:$0xff]
    %v57 = vld [vmem:[%s0 + $0x108] sm:$0xff]
    %v58 = vld [vmem:[%s0 + $0x110] sm:$0xff]
    %v59 = vld [vmem:[%s0 + $0x118] sm:$0xff]
    %v60 = vld [vmem:[%s0 + $0x120] sm:$0xff]
    %v61 = vld [vmem:[%s0 + $0x128] sm:$0xff]
    %v62 = vld [vmem:[%s0 + $0x130] sm:$0xff]
    %v63 = vld [vmem:[%s0 + $0x138] sm:$0xff]
    %v64 = vld [vmem:[%s0 + $0x140] sm:$0xff]
    %v65 = vld [vmem:[%s0 + $0x148] sm:$0xff]
    %v66 = vld [vmem:[%s0 + $0x150] sm:$0xff]
    %v67 = vld [vmem:[%s0 + $0x158] sm:$0xff]
    %v68 = vld [vmem:[%s0 + $0x160] sm:$0xff]
    %v69 = vld [vmem:[%s0 + $0x168] sm:$0xff]
    %v70 = vld [vmem:[%s0 + $0x170] sm:$0xff]
    %v71 = vld [vmem:[%s0 + $0x178] sm:$0xff]
    %v72 = vld [vmem:[%s0 + $0x180] sm:$0xff]
    %v73 = vld [vmem:[%s0 + $0x188] sm:$0xff]
    %v74 = vld [vmem:[%s0 + $0x190] sm:$0xff]
    %v75 = vld [vmem:[%s0 + $0x198] sm:$0xff]
    %v76 = vld [vmem:[%s0 + $0x1a0] sm:$0xff]
    %v77 = vld [vmem:[%s0 + $0x1a8] sm:$0xff]
    %v78 = vld [vmem:[%s0 + $0x1b0] sm:$0xff]
    %v79 = vld [vmem:[%s0 + $0x1b8] sm:$0xff]
    %v80 = vld [vmem:[%s0 + $0x1c0] sm:$0xff]
    %v81 = vld [vmem:[%s0 + $0x1c8] sm:$0xff]
    %v82 = vld [vmem:[%s0 + $0x1d0] sm:$0xff]
    %v83 = vld [vmem:[%s0 + $0x1d8] sm:$0xff]
    %v84 = vld [vmem:[%s0 + $0x1e0] sm:$0xff]
    %v85 = vld [vmem:[%s0 + $0x1e8] sm:$0xff]
    %v86 = vld [vmem:[%s0 + $0x1f0] sm:$0xff]
    %v87 = vld [vmem:[%s0 + $0x1f8] sm:$0xff]
    %v88 = vld [vmem:[%s0 + $0x200] sm:$0xff]
    %v89 = vld [vmem:[%s0 + $0x208] sm:$0xff]
    %v90 = vld [vmem:[%s0 + $0x210] sm:$0xff]
    %v91 = vld [vmem:[%s0 + $0x218] sm:$0xff]
    %v92 = vld [vmem:[%s0 + $0x220] sm:$0xff]
    %v93 = vld [vmem:[%s0 + $0x228] sm:$0xff]
    %v94 = vld [vmem:[%s0 + $0x230] sm:$0xff]
    %v95 = vld [vmem:[%s0 + $0x238] sm:$0xff]
    %v96 = vld [vmem:[%s0 + $0x240] sm:$0xff]
    %v97 = vld [vmem:[%s0 + $0x248] sm:$0xff]
    %v98 = vld [vmem:[%s0 + $0x250] sm:$0xff]
    %v99 = vld [vmem:[%s0 + $0x258] sm:$0xff]
    %v100 = vld [vmem:[%s0 + $0x260] sm:$0xff]
    %v101 = vld [vmem:[%s0 + $0x268] sm:$0xff]
    %v102 = vld [vmem:[%s0 + $0x270] sm:$0xff]
    %v103 = vld [vmem:[%s0 + $0x278] sm:$0xff]
    %v104 = vld [vmem:[%s0 + $0x280] sm:$0xff]
    %v105 = vld [vmem:[%s0 + $0x288] sm:$0xff]
    %v106 = vld [vmem:[%s0 + $0x290] sm:$0xff]
    %v107 = vld [vmem:[%s0 + $0x298] sm:$0xff]
    %v108 = vld [vmem:[%s0 + $0x2a0] sm:$0xff]
    %v109 = vld [vmem:[%s0 + $0x2a8] sm:$0xff]
    %v110 = vld [vmem:[%s0 + $0x2b0] sm:$0xff]
    %v111 = vld [vmem:[%s0 + $0x2b8] sm:$0xff]
    %v112 = vld [vmem:[%s0 + $0x2c0] sm:$0xff]
    %v113 = vld [vmem:[%s0 + $0x2c8] sm:$0xff]
    %v114 = vld [vmem:[%s0 + $0x2d0] sm:$0xff]
    %v115 = vld [vmem:[%s0 + $0x2d8] sm:$0xff]
    %v116 = vld [vmem:[%s0 + $0x2e0] sm:$0xff]
    %v117 = vld [vmem:[%s0 + $0x2e8] sm:$0xff]
    %v118 = vld [vmem:[%s0 + $0x2f0] sm:$0xff]
    %v119 = vld [vmem:[%s0 + $0x2f8] sm:$0xff]
    %v120 = vld [vmem:[%s0 + $0x300] sm:$0xff]
    %v121 = vld [vmem:[%s0 + $0x308] sm:$0xff]
    %v122 = vld [vmem:[%s0 + $0x310] sm:$0xff]
    %v123 = vld [vmem:[%s0 + $0x318] sm:$0xff]
    %v124 = vld [vmem:[%s0 + $0x320] sm:$0xff]
    %v125 = vld [vmem:[%s0 + $0x328] sm:$0xff]
    %v126 = vld [vmem:[%s0 + $0x330] sm:$0xff]
    %v127 = vld [vmem:[%s0 + $0x338] sm:$0xff]
    %v128 = vld [vmem:[%s0 + $0x340] sm:$0xff]
    %v129 = vld [vmem:[%s0 + $0x348] sm:$0xff]
    %v130 = vld [vmem:[%s0 + $0x350] sm:$0xff]
    %v131 = vld [vmem:[%s0 + $0x358] sm:$0xff]
    %v132 = vld [vmem:[%s0 + $0x360] sm:$0xff]
    %v133 = vld [vmem:[%s0 + $0x368] sm:$0xff]
    %v134 = vld [vmem:[%s0 + $0x370] sm:$0xff]
    %v135 = vld [vmem:[%s0 + $0x378] sm:$0xff]
    %v136 = vld [vmem:[%s0 + $0x380] sm:$0xff]
    %v137 = vld [vmem:[%s0 + $0x388] sm:$0xff]
    %v138 = vld [vmem:[%s0 + $0x390] sm:$0xff]
    %v139 = vld [vmem:[%s0 + $0x398] sm:$0xff]
    %v140 = vld [vmem:[%s0 + $0x3a0] sm:$0xff]
    %v141 = vld [vmem:[%s0 + $0x3a8] sm:$0xff]
    %v142 = vld [vmem:[%s0 + $0x3b0] sm:$0xff]
    %v143 = vld [vmem:[%s0 + $0x3b8] sm:$0xff]
    %v144 = vld [vmem:[%s0 + $0x3c0] sm:$0xff]
    %v145 = vld [vmem:[%s0 + $0x3c8] sm:$0xff]
    %v146 = vld [vmem:[%s0 + $0x3d0] sm:$0xff]
    %v147 = vld [vmem:[%s0 + $0x3d8] sm:$0xff]
    %v148 = vld [vmem:[%s0 + $0x3e0] sm:$0xff]
    %v149 = vld [vmem:[%s0 + $0x3e8] sm:$0xff]
    %v150 = vld [vmem:[%s0 + $0x3f0] sm:$0xff]
    %v151 = vld [vmem:[%s0 + $0x3f8] sm:$0xff]
    %v152 = vld [vmem:[%s0 + $0x400] sm:$0xff]
    %v153 = vld [vmem:[%s0 + $0x408] sm:$0xff]
    %v154 = vld [vmem:[%s0 + $0x410] sm:$0xff]
    %v155 = vld [vmem:[%s0 + $0x418] sm:$0xff]
    %v156 = vld [vmem:[%s0 + $0x420] sm:$0xff]
    %v157 = vld [vmem:[%s0 + $0x428] sm:$0xff]
    %v158 = vld [vmem:[%s0 + $0x430] sm:$0xff]
    %v159 = vld [vmem:[%s0 + $0x438] sm:$0xff]
    %v160 = vld [vmem:[%s0 + $0x440] sm:$0xff]
    %v161 = vld [vmem:[%s0 + $0x448] sm:$0xff]
    %v162 = vld [vmem:[%s0 + $0x450] sm:$0xff]
    %v163 = vld [vmem:[%s0 + $0x458] sm:$0xff]
    %v164 = vld [vmem:[%s0 + $0x460] sm:$0xff]
    %v165 = vld [vmem:[%s0 + $0x468] sm:$0xff]
    %v166 = vld [vmem:[%s0 + $0x470] sm:$0xff]
    %v167 = vld [vmem:[%s0 + $0x478] sm:$0xff]
    %v168 = vld [vmem:[%s0 + $0x480] sm:$0xff]
    %v169 = vld [vmem:[%s0 + $0x488] sm:$0xff]
    %v170 = vld [vmem:[%s0 + $0x490] sm:$0xff]
    %v171 = vld [vmem:[%s0 + $0x498] sm:$0xff]
    %v172 = vld [vmem:[%s0 + $0x4a0] sm:$0xff]
    %v173 = vld [vmem:[%s0 + $0x4a8] sm:$0xff]
    %v174 = vld [vmem:[%s0 + $0x4b0] sm:$0xff]
    %v175 = vld [vmem:[%s0 + $0x4b8] sm:$0xff]
    %v176 = vld [vmem:[%s0 + $0x4c0] sm:$0xff]
    %v177 = vld [vmem:[%s0 + $0x4c8] sm:$0xff]
    %v178 = vld [vmem:[%s0 + $0x4d0] sm:$0xff]
    %v179 = vld [vmem:[%s0 + $0x4d8] sm:$0xff]
    %v180 = vld [vmem:[%s0 + $0x4e0] sm:$0xff]
    %v181 = vld [vmem:[%s0 + $0x4e8] sm:$0xff]
    %v182 = vld [vmem:[%s0 + $0x4f0] sm:$0xff]
    %v183 = vld [vmem:[%s0 + $0x4f8] sm:$0xff]
    %v184 = vld [vmem:[%s0 + $0x500] sm:$0xff]
    %v185 = vld [vmem:[%s0 + $0x508] sm:$0xff]
    %v186 = vld [vmem:[%s0 + $0x510] sm:$0xff]
    %v187 = vld [vmem:[%s0 + $0x518] sm:$0xff]
    %v188 = vld [vmem:[%s0 + $0x520] sm:$0xff]
    %v189 = vld [vmem:[%s0 + $0x528] sm:$0xff]
    %v190 = vld [vmem:[%s0 + $0x530] sm:$0xff]
    %v191 = vld [vmem:[%s0 + $0x538] sm:$0xff]
    %v192 = vld [vmem:[%s0 + $0x540] sm:$0xff]
    %v193 = vld [vmem:[%s0 + $0x548] sm:$0xff]
    %v194 = vld [vmem:[%s0 + $0x550] sm:$0xff]
    %v195 = vld [vmem:[%s0 + $0x558] sm:$0xff]
    %v196 = vld [vmem:[%s0 + $0x560] sm:$0xff]
    %v197 = vld [vmem:[%s0 + $0x568] sm:$0xff]
    %v198 = vld [vmem:[%s0 + $0x570] sm:$0xff]
    %v199 = vld [vmem:[%s0 + $0x578] sm:$0xff]
    %v200 = vld [vmem:[%s0 + $0x580] sm:$0xff]
    %v201 = vld [vmem:[%s0 + $0x588] sm:$0xff]
    %v202 = vld [vmem:[%s0 + $0x590] sm:$0xff]
    %v203 = vld [vmem:[%s0 + $0x598] sm:$0xff]
    %v204 = vld [vmem:[%s0 + $0x5a0] sm:$0xff]
    %v205 = vld [vmem:[%s0 + $0x5a8] sm:$0xff]
    %v206 = vld [vmem:[%s0 + $0x5b0] sm:$0xff]
    %v207 = vld [vmem:[%s0 + $0x5b8] sm:$0xff]
    %v208 = vld [vmem:[%s0 + $0x5c0] sm:$0xff]
    %v209 = vld [vmem:[%s0 + $0x5c8] sm:$0xff]
    %v210 = vld [vmem:[%s0 + $0x5d0] sm:$0xff]
    %v211 = vld [vmem:[%s0 + $0x5d8] sm:$0xff]
    %v212 = vld [vmem:[%s0 + $0x5e0] sm:$0xff]
    %v213 = vld [vmem:[%s0 + $0x5e8] sm:$0xff]
    %v214 = vld [vmem:[%s0 + $0x5f0] sm:$0xff]
    %v215 = vld [vmem:[%s0 + $0x5f8] sm:$0xff]
    %v216 = vld [vmem:[%s0 + $0x600] sm:$0xff]
    %v217 = vld [vmem:[%s0 + $0x608] sm:$0xff]
    %v218 = vld [vmem:[%s0 + $0x610] sm:$0xff]
    %v219 = vld [vmem:[%s0 + $0x618] sm:$0xff]
    %v220 = vld [vmem:[%s0 + $0x620] sm:$0xff]
    %v221 = vld [vmem:[%s0 + $0x628] sm:$0xff]
    %v222 = vld [vmem:[%s0 + $0x630] sm:$0xff]
    %v223 = vld [vmem:[%s0 + $0x638] sm:$0xff]
    %v224 = vld [vmem:[%s0 + $0x640] sm:$0xff]
    %v225 = vld [vmem:[%s0 + $0x648] sm:$0xff]
    %v226 = vld [vmem:[%s0 + $0x650] sm:$0xff]
    %v227 = vld [vmem:[%s0 + $0x658] sm:$0xff]
    %v228 = vld [vmem:[%s0 + $0x660] sm:$0xff]
    %v229 = vld [vmem:[%s0 + $0x668] sm:$0xff]
    %v230 = vld [vmem:[%s0 + $0x670] sm:$0xff]
    %v231 = vld [vmem:[%s0 + $0x678] sm:$0xff]
    %v232 = vld [vmem:[%s0 + $0x680] sm:$0xff]
    %v233 = vld [vmem:[%s0 + $0x688] sm:$0xff]
    %v234 = vld [vmem:[%s0 + $0x690] sm:$0xff]
    %v235 = vld [vmem:[%s0 + $0x698] sm:$0xff]
    %v236 = vld [vmem:[%s0 + $0x6a0] sm:$0xff]
    %v237 = vld [vmem:[%s0 + $0x6a8] sm:$0xff]
    %v238 = vld [vmem:[%s0 + $0x6b0] sm:$0xff]
    %v239 = vld [vmem:[%s0 + $0x6b8] sm:$0xff]
    %v240 = vld [vmem:[%s0 + $0x6c0] sm:$0xff]
    %v241 = vld [vmem:[%s0 + $0x6c8] sm:$0xff]
    %v242 = vld [vmem:[%s0 + $0x6d0] sm:$0xff]
    %v243 = vld [vmem:[%s0 + $0x6d8] sm:$0xff]
    %v244 = vld [vmem:[%s0 + $0x6e0] sm:$0xff]
    %v245 = vld [vmem:[%s0 + $0x6e8] sm:$0xff]
    %v246 = vld [vmem:[%s0 + $0x6f0] sm:$0xff]
    %v247 = vld [vmem:[%s0 + $0x6f8] sm:$0xff]
    %v248 = vld [vmem:[%s0 + $0x700] sm:$0xff]
    %v249 = vld [vmem:[%s0 + $0x708] sm:$0xff]
    %v250 = vld [vmem:[%s0 + $0x710] sm:$0xff]
    %v251 = vld [vmem:[%s0 + $0x718] sm:$0xff]
    %v252 = vld [vmem:[%s0 + $0x720] sm:$0xff]
    %v253 = vld [vmem:[%s0 + $0x728] sm:$0xff]
    %v254 = vld [vmem:[%s0 + $0x730] sm:$0xff]
    %v255 = vld [vmem:[%s0 + $0x738] sm:$0xff]
    %v256 = vld [vmem:[%s0 + $0x740] sm:$0xff]
    %v257 = vld [vmem:[%s0 + $0x748] sm:$0xff]
    %v258 = vld [vmem:[%s0 + $0x750] sm:$0xff]
    %v259 = vld [vmem:[%s0 + $0x758] sm:$0xff]
    %v260 = vld [vmem:[%s0 + $0x760] sm:$0xff]
    %v261 = vld [vmem:[%s0 + $0x768] sm:$0xff]
    %v262 = vld [vmem:[%s0 + $0x770] sm:$0xff]
    %v263 = vld [vmem:[%s0 + $0x778] sm:$0xff]
    %v264 = vld [vmem:[%s0 + $0x780] sm:$0xff]
    %v265 = vld [vmem:[%s0 + $0x788] sm:$0xff]
    %v266 = vld [vmem:[%s0 + $0x790] sm:$0xff]
    %v267 = vld [vmem:[%s0 + $0x798] sm:$0xff]
    %v268 = vld [vmem:[%s0 + $0x7a0] sm:$0xff]
    %v269 = vld [vmem:[%s0 + $0x7a8] sm:$0xff]
    %v270 = vld [vmem:[%s0 + $0x7b0] sm:$0xff]
    %v271 = vld [vmem:[%s0 + $0x7b8] sm:$0xff]
    %v272 = vld [vmem:[%s0 + $0x7c0] sm:$0xff]
    %v273 = vld [vmem:[%s0 + $0x7c8] sm:$0xff]
    %v274 = vld [vmem:[%s0 + $0x7d0] sm:$0xff]
    %v275 = vld [vmem:[%s0 + $0x7d8] sm:$0xff]
    %v276 = vld [vmem:[%s0 + $0x7e0] sm:$0xff]
    %v277 = vld [vmem:[%s0 + $0x7e8] sm:$0xff]
    %v278 = vld [vmem:[%s0 + $0x7f0] sm:$0xff]
    %v279 = vld [vmem:[%s0 + $0x7f8] sm:$0xff]
    %v280 = vld [vmem:[%s1] sm:$0xff]
    %v281 = vld [vmem:[%s1 + $0x8] sm:$0xff]
    %v282 = vld [vmem:[%s1 + $0x10] sm:$0xff]
    %v283 = vld [vmem:[%s1 + $0x18] sm:$0xff]
    %v284 = vld [vmem:[%s1 + $0x20] sm:$0xf]
    %v285 = vld [vmem:[%s2] sm:$0x1]
    %v287 = vlaneseq
    %v288 = vshrl.u32 %v287, 7
    %v289 = vsub.s32 0, %v288
    %v290 = vrot.slane %v285, %v289
    %vm292 = vcmask 293888
    %v294 = vsel %vm292, %v24, 0
    %v297 = vsel %vm292, %v25, 0
    %v300 = vsel %vm292, %v26, 0
    %v303 = vsel %vm292, %v27, 0
    %v306 = vsel %vm292, %v28, 0
    %v309 = vsel %vm292, %v29, 0
    %v312 = vsel %vm292, %v30, 0
    %v315 = vsel %vm292, %v31, 0
    %v318 = vsel %vm292, %v32, 0
    %v321 = vsel %vm292, %v33, 0
    %v324 = vsel %vm292, %v34, 0
    %v327 = vsel %vm292, %v35, 0
    %v330 = vsel %vm292, %v36, 0
    %v333 = vsel %vm292, %v37, 0
    %v336 = vsel %vm292, %v38, 0
    %v339 = vsel %vm292, %v39, 0
    %v342 = vsel %vm292, %v40, 0
    %v345 = vsel %vm292, %v41, 0
    %v348 = vsel %vm292, %v42, 0
    %v351 = vsel %vm292, %v43, 0
    %v354 = vsel %vm292, %v44, 0
    %v357 = vsel %vm292, %v45, 0
    %v360 = vsel %vm292, %v46, 0
    %v363 = vsel %vm292, %v47, 0
    %v366 = vsel %vm292, %v48, 0
    %v369 = vsel %vm292, %v49, 0
    %v372 = vsel %vm292, %v50, 0
    %v375 = vsel %vm292, %v51, 0
    %v378 = vsel %vm292, %v52, 0
    %v381 = vsel %vm292, %v53, 0
    %v384 = vsel %vm292, %v54, 0
    %v387 = vsel %vm292, %v55, 0
    %v390 = vsel %vm292, %v56, 0
    %v393 = vsel %vm292, %v57, 0
    %v396 = vsel %vm292, %v58, 0
    %v399 = vsel %vm292, %v59, 0
    %v402 = vsel %vm292, %v60, 0
    %v405 = vsel %vm292, %v61, 0
    %v408 = vsel %vm292, %v62, 0
    %v411 = vsel %vm292, %v63, 0
    %v414 = vsel %vm292, %v64, 0
    %v417 = vsel %vm292, %v65, 0
    %v420 = vsel %vm292, %v66, 0
    %v423 = vsel %vm292, %v67, 0
    %v426 = vsel %vm292, %v68, 0
    %v429 = vsel %vm292, %v69, 0
    %v432 = vsel %vm292, %v70, 0
    %v435 = vsel %vm292, %v71, 0
    %v438 = vsel %vm292, %v72, 0
    %v441 = vsel %vm292, %v73, 0
    %v444 = vsel %vm292, %v74, 0
    %v447 = vsel %vm292, %v75, 0
    %v450 = vsel %vm292, %v76, 0
    %v453 = vsel %vm292, %v77, 0
    %v456 = vsel %vm292, %v78, 0
    %v459 = vsel %vm292, %v79, 0
    %v462 = vsel %vm292, %v80, 0
    %v465 = vsel %vm292, %v81, 0
    %v468 = vsel %vm292, %v82, 0
    %v471 = vsel %vm292, %v83, 0
    %v474 = vsel %vm292, %v84, 0
    %v477 = vsel %vm292, %v85, 0
    %v480 = vsel %vm292, %v86, 0
    %v483 = vsel %vm292, %v87, 0
    %v486 = vsel %vm292, %v88, 0
    %v489 = vsel %vm292, %v89, 0
    %v492 = vsel %vm292, %v90, 0
    %v495 = vsel %vm292, %v91, 0
    %v498 = vsel %vm292, %v92, 0
    %v501 = vsel %vm292, %v93, 0
    %v504 = vsel %vm292, %v94, 0
    %v507 = vsel %vm292, %v95, 0
    %v510 = vsel %vm292, %v96, 0
    %v513 = vsel %vm292, %v97, 0
    %v516 = vsel %vm292, %v98, 0
    %v519 = vsel %vm292, %v99, 0
    %v522 = vsel %vm292, %v100, 0
    %v525 = vsel %vm292, %v101, 0
    %v528 = vsel %vm292, %v102, 0
    %v531 = vsel %vm292, %v103, 0
    %v534 = vsel %vm292, %v104, 0
    %v537 = vsel %vm292, %v105, 0
    %v540 = vsel %vm292, %v106, 0
    %v543 = vsel %vm292, %v107, 0
    %v546 = vsel %vm292, %v108, 0
    %v549 = vsel %vm292, %v109, 0
    %v552 = vsel %vm292, %v110, 0
    %v555 = vsel %vm292, %v111, 0
    %v558 = vsel %vm292, %v112, 0
    %v561 = vsel %vm292, %v113, 0
    %v564 = vsel %vm292, %v114, 0
    %v567 = vsel %vm292, %v115, 0
    %v570 = vsel %vm292, %v116, 0
    %v573 = vsel %vm292, %v117, 0
    %v576 = vsel %vm292, %v118, 0
    %v579 = vsel %vm292, %v119, 0
    %v582 = vsel %vm292, %v120, 0
    %v585 = vsel %vm292, %v121, 0
    %v588 = vsel %vm292, %v122, 0
    %v591 = vsel %vm292, %v123, 0
    %v594 = vsel %vm292, %v124, 0
    %v597 = vsel %vm292, %v125, 0
    %v600 = vsel %vm292, %v126, 0
    %v603 = vsel %vm292, %v127, 0
    %v606 = vsel %vm292, %v128, 0
    %v609 = vsel %vm292, %v129, 0
    %v612 = vsel %vm292, %v130, 0
    %v615 = vsel %vm292, %v131, 0
    %v618 = vsel %vm292, %v132, 0
    %v621 = vsel %vm292, %v133, 0
    %v624 = vsel %vm292, %v134, 0
    %v627 = vsel %vm292, %v135, 0
    %v630 = vsel %vm292, %v136, 0
    %v633 = vsel %vm292, %v137, 0
    %v636 = vsel %vm292, %v138, 0
    %v639 = vsel %vm292, %v139, 0
    %v642 = vsel %vm292, %v140, 0
    %v645 = vsel %vm292, %v141, 0
    %v648 = vsel %vm292, %v142, 0
    %v651 = vsel %vm292, %v143, 0
    %v654 = vsel %vm292, %v144, 0
    %v657 = vsel %vm292, %v145, 0
    %v660 = vsel %vm292, %v146, 0
    %v663 = vsel %vm292, %v147, 0
    %v666 = vsel %vm292, %v148, 0
    %v669 = vsel %vm292, %v149, 0
    %v672 = vsel %vm292, %v150, 0
    %v675 = vsel %vm292, %v151, 0
    %v678 = vsel %vm292, %v152, 0
    %v681 = vsel %vm292, %v153, 0
    %v684 = vsel %vm292, %v154, 0
    %v687 = vsel %vm292, %v155, 0
    %v690 = vsel %vm292, %v156, 0
    %v693 = vsel %vm292, %v157, 0
    %v696 = vsel %vm292, %v158, 0
    %v699 = vsel %vm292, %v159, 0
    %v702 = vsel %vm292, %v160, 0
    %v705 = vsel %vm292, %v161, 0
    %v708 = vsel %vm292, %v162, 0
    %v711 = vsel %vm292, %v163, 0
    %v714 = vsel %vm292, %v164, 0
    %v717 = vsel %vm292, %v165, 0
    %v720 = vsel %vm292, %v166, 0
    %v723 = vsel %vm292, %v167, 0
    %v726 = vsel %vm292, %v168, 0
    %v729 = vsel %vm292, %v169, 0
    %v732 = vsel %vm292, %v170, 0
    %v735 = vsel %vm292, %v171, 0
    %v738 = vsel %vm292, %v172, 0
    %v741 = vsel %vm292, %v173, 0
    %v744 = vsel %vm292, %v174, 0
    %v747 = vsel %vm292, %v175, 0
    %v750 = vsel %vm292, %v176, 0
    %v753 = vsel %vm292, %v177, 0
    %v756 = vsel %vm292, %v178, 0
    %v759 = vsel %vm292, %v179, 0
    %v762 = vsel %vm292, %v180, 0
    %v765 = vsel %vm292, %v181, 0
    %v768 = vsel %vm292, %v182, 0
    %v771 = vsel %vm292, %v183, 0
    %v774 = vsel %vm292, %v184, 0
    %v777 = vsel %vm292, %v185, 0
    %v780 = vsel %vm292, %v186, 0
    %v783 = vsel %vm292, %v187, 0
    %v786 = vsel %vm292, %v188, 0
    %v789 = vsel %vm292, %v189, 0
    %v792 = vsel %vm292, %v190, 0
    %v795 = vsel %vm292, %v191, 0
    %v798 = vsel %vm292, %v192, 0
    %v801 = vsel %vm292, %v193, 0
    %v804 = vsel %vm292, %v194, 0
    %v807 = vsel %vm292, %v195, 0
    %v810 = vsel %vm292, %v196, 0
    %v813 = vsel %vm292, %v197, 0
    %v816 = vsel %vm292, %v198, 0
    %v819 = vsel %vm292, %v199, 0
    %v822 = vsel %vm292, %v200, 0
    %v825 = vsel %vm292, %v201, 0
    %v828 = vsel %vm292, %v202, 0
    %v831 = vsel %vm292, %v203, 0
    %v834 = vsel %vm292, %v204, 0
    %v837 = vsel %vm292, %v205, 0
    %v840 = vsel %vm292, %v206, 0
    %v843 = vsel %vm292, %v207, 0
    %v846 = vsel %vm292, %v208, 0
    %v849 = vsel %vm292, %v209, 0
    %v852 = vsel %vm292, %v210, 0
    %v855 = vsel %vm292, %v211, 0
    %v858 = vsel %vm292, %v212, 0
    %v861 = vsel %vm292, %v213, 0
    %v864 = vsel %vm292, %v214, 0
    %v867 = vsel %vm292, %v215, 0
    %v870 = vsel %vm292, %v216, 0
    %v873 = vsel %vm292, %v217, 0
    %v876 = vsel %vm292, %v218, 0
    %v879 = vsel %vm292, %v219, 0
    %v882 = vsel %vm292, %v220, 0
    %v885 = vsel %vm292, %v221, 0
    %v888 = vsel %vm292, %v222, 0
    %v891 = vsel %vm292, %v223, 0
    %v894 = vsel %vm292, %v224, 0
    %v897 = vsel %vm292, %v225, 0
    %v900 = vsel %vm292, %v226, 0
    %v903 = vsel %vm292, %v227, 0
    %v906 = vsel %vm292, %v228, 0
    %v909 = vsel %vm292, %v229, 0
    %v912 = vsel %vm292, %v230, 0
    %v915 = vsel %vm292, %v231, 0
    %v918 = vsel %vm292, %v232, 0
    %v921 = vsel %vm292, %v233, 0
    %v924 = vsel %vm292, %v234, 0
    %v927 = vsel %vm292, %v235, 0
    %v930 = vsel %vm292, %v236, 0
    %v933 = vsel %vm292, %v237, 0
    %v936 = vsel %vm292, %v238, 0
    %v939 = vsel %vm292, %v239, 0
    %v942 = vsel %vm292, %v240, 0
    %v945 = vsel %vm292, %v241, 0
    %v948 = vsel %vm292, %v242, 0
    %v951 = vsel %vm292, %v243, 0
    %v954 = vsel %vm292, %v244, 0
    %v957 = vsel %vm292, %v245, 0
    %v960 = vsel %vm292, %v246, 0
    %v963 = vsel %vm292, %v247, 0
    %v966 = vsel %vm292, %v248, 0
    %v969 = vsel %vm292, %v249, 0
    %v972 = vsel %vm292, %v250, 0
    %v975 = vsel %vm292, %v251, 0
    %v978 = vsel %vm292, %v252, 0
    %v981 = vsel %vm292, %v253, 0
    %v984 = vsel %vm292, %v254, 0
    %v987 = vsel %vm292, %v255, 0
    %v990 = vsel %vm292, %v256, 0
    %v993 = vsel %vm292, %v257, 0
    %v996 = vsel %vm292, %v258, 0
    %v999 = vsel %vm292, %v259, 0
    %v1002 = vsel %vm292, %v260, 0
    %v1005 = vsel %vm292, %v261, 0
    %v1008 = vsel %vm292, %v262, 0
    %v1011 = vsel %vm292, %v263, 0
    %v1014 = vsel %vm292, %v264, 0
    %v1017 = vsel %vm292, %v265, 0
    %v1020 = vsel %vm292, %v266, 0
    %v1023 = vsel %vm292, %v267, 0
    %v1026 = vsel %vm292, %v268, 0
    %v1029 = vsel %vm292, %v269, 0
    %v1032 = vsel %vm292, %v270, 0
    %v1035 = vsel %vm292, %v271, 0
    %v1038 = vsel %vm292, %v272, 0
    %v1041 = vsel %vm292, %v273, 0
    %v1044 = vsel %vm292, %v274, 0
    %v1047 = vsel %vm292, %v275, 0
    %v1050 = vsel %vm292, %v276, 0
    %v1053 = vsel %vm292, %v277, 0
    %v1056 = vsel %vm292, %v278, 0
    %v1059 = vsel %vm292, %v279, 0
    %vm1061 = vcmask 1043456
    %v1063 = vsel %vm1061, %v284, 0
    %1065 = vmatprep.subr.mxu0 0.0
    %1066 = vmatpush1.msra.mxu0 0.0
    %1067 = vmatprep.subr.mxu0 0.0
    %1068 = vmatpush1.msra.mxu0 0.0
    %1069 = vmatprep.subr.mxu0 0.0
    %1070 = vmatpush1.msra.mxu0 0.0
    %1071 = vmatprep.subr.mxu0 0.0
    %1072 = vmatpush1.msra.mxu0 0.0
    %1073 = vmatprep.subr.mxu0 0.0
    %1074 = vmatpush1.msra.mxu0 0.0
    %1075 = vmatprep.subr.mxu0 0.0
    %1076 = vmatpush1.msra.mxu0 0.0
    %1077 = vmatprep.subr.mxu0 0.0
    %1078 = vmatpush1.msra.mxu0 0.0
    %1079 = vmatprep.subr.mxu0 0.0
    %1080 = vmatpush1.msra.mxu0 0.0
    %1081 = vmatprep.subr.mxu0 0.0
    %1082 = vmatpush1.msra.mxu0 0.0
    %1083 = vmatprep.subr.mxu0 0.0
    %1084 = vmatpush1.msra.mxu0 0.0
    %1085 = vmatprep.subr.mxu0 0.0
    %1086 = vmatpush1.msra.mxu0 0.0
    %1087 = vmatprep.subr.mxu0 0.0
    %1088 = vmatpush1.msra.mxu0 %v1063
    %1089 = vmatprep.subr.mxu0 0.0
    %1090 = vmatpush1.msra.mxu0 %v283
    %1091 = vmatprep.subr.mxu0 0.0
    %1092 = vmatpush1.msra.mxu0 %v282
    %1093 = vmatprep.subr.mxu0 0.0
    %1094 = vmatpush1.msra.mxu0 %v281
    %1095 = vmatprep.subr.mxu0 0.0
    %1096 = vmatpush1.msra.mxu0 %v280
    %1097 = vmatprep.subr.mxu0 0.0
    %1098 = vmatpush2.msra.mxu0 0.0
    %1099 = vmatprep.subr.mxu0 0.0
    %1100 = vmatpush2.msra.mxu0 0.0
    %1101 = vmatprep.subr.mxu0 0.0
    %1102 = vmatpush2.msra.mxu0 0.0
    %1103 = vmatprep.subr.mxu0 0.0
    %1104 = vmatpush2.msra.mxu0 0.0
    %1105 = vmatprep.subr.mxu0 0.0
    %1106 = vmatpush2.msra.mxu0 0.0
    %1107 = vmatprep.subr.mxu0 0.0
    %1108 = vmatpush2.msra.mxu0 0.0
    %1109 = vmatprep.subr.mxu0 0.0
    %1110 = vmatpush2.msra.mxu0 0.0
    %1111 = vmatprep.subr.mxu0 0.0
    %1112 = vmatpush2.msra.mxu0 0.0
    %1113 = vmatprep.subr.mxu0 0.0
    %1114 = vmatpush2.msra.mxu0 0.0
    %1115 = vmatprep.subr.mxu0 0.0
    %1116 = vmatpush2.msra.mxu0 0.0
    %1117 = vmatprep.subr.mxu0 0.0
    %1118 = vmatpush2.msra.mxu0 0.0
    %1119 = vmatprep.subr.mxu0 0.0
    %1120 = vmatpush2.msra.mxu0 0.0
    %1121 = vmatprep.subr.mxu0 0.0
    %1122 = vmatpush2.msra.mxu0 0.0
    %1123 = vmatprep.subr.mxu0 0.0
    %1124 = vmatpush2.msra.mxu0 0.0
    %1125 = vmatprep.subr.mxu0 0.0
    %1126 = vmatpush2.msra.mxu0 0.0
    %1127 = vmatprep.subr.mxu0 0.0
    %1128 = vmatpush2.msra.mxu0 0.0
    %1129 = vmatprep.mubr.f32.mxu0 0.0
    %1130 = vmatmul.mubr.f32.gmra.mxu0 %v294
    %v1131 = vpop.f32.mrf.mxu0
    %v1132 = vadd.f32 %v290, %v1131
    %v1133 = vpop.f32.mrf.mxu0
    %1134 = vmatprep.mubr.f32.mxu0 0.0
    %1135 = vmatmul.mubr.f32.gmra.mxu0 %v297
    %v1136 = vpop.f32.mrf.mxu0
    %v1137 = vadd.f32 %v290, %v1136
    %v1138 = vpop.f32.mrf.mxu0
    %1139 = vmatprep.mubr.f32.mxu0 0.0
    %1140 = vmatmul.mubr.f32.gmra.mxu0 %v300
    %v1141 = vpop.f32.mrf.mxu0
    %v1142 = vadd.f32 %v290, %v1141
    %v1143 = vpop.f32.mrf.mxu0
    %1144 = vmatprep.mubr.f32.mxu0 0.0
    %1145 = vmatmul.mubr.f32.gmra.mxu0 %v303
    %v1146 = vpop.f32.mrf.mxu0
    %v1147 = vadd.f32 %v290, %v1146
    %v1148 = vpop.f32.mrf.mxu0
    %1149 = vmatprep.mubr.f32.mxu0 0.0
    %1150 = vmatmul.mubr.f32.gmra.mxu0 %v306
    %v1151 = vpop.f32.mrf.mxu0
    %v1152 = vadd.f32 %v290, %v1151
    %v1153 = vpop.f32.mrf.mxu0
    %1154 = vmatprep.mubr.f32.mxu0 0.0
    %1155 = vmatmul.mubr.f32.gmra.mxu0 %v309
    %v1156 = vpop.f32.mrf.mxu0
    %v1157 = vadd.f32 %v290, %v1156
    %v1158 = vpop.f32.mrf.mxu0
    %1159 = vmatprep.mubr.f32.mxu0 0.0
    %1160 = vmatmul.mubr.f32.gmra.mxu0 %v312
    %v1161 = vpop.f32.mrf.mxu0
    %v1162 = vadd.f32 %v290, %v1161
    %v1163 = vpop.f32.mrf.mxu0
    %1164 = vmatprep.mubr.f32.mxu0 0.0
    %1165 = vmatmul.mubr.f32.gmra.mxu0 %v315
    %v1166 = vpop.f32.mrf.mxu0
    %v1167 = vadd.f32 %v290, %v1166
    %v1168 = vpop.f32.mrf.mxu0
    %1169 = vmatprep.mubr.f32.mxu0 0.0
    %1170 = vmatmul.mubr.f32.gmra.mxu0 %v318
    %v1171 = vpop.f32.mrf.mxu0
    %v1172 = vadd.f32 %v290, %v1171
    %v1173 = vpop.f32.mrf.mxu0
    %1174 = vmatprep.mubr.f32.mxu0 0.0
    %1175 = vmatmul.mubr.f32.gmra.mxu0 %v321
    %v1176 = vpop.f32.mrf.mxu0
    %v1177 = vadd.f32 %v290, %v1176
    %v1178 = vpop.f32.mrf.mxu0
    %1179 = vmatprep.mubr.f32.mxu0 0.0
    %1180 = vmatmul.mubr.f32.gmra.mxu0 %v324
    %v1181 = vpop.f32.mrf.mxu0
    %v1182 = vadd.f32 %v290, %v1181
    %v1183 = vpop.f32.mrf.mxu0
    %1184 = vmatprep.mubr.f32.mxu0 0.0
    %1185 = vmatmul.mubr.f32.gmra.mxu0 %v327
    %v1186 = vpop.f32.mrf.mxu0
    %v1187 = vadd.f32 %v290, %v1186
    %v1188 = vpop.f32.mrf.mxu0
    %1189 = vmatprep.mubr.f32.mxu0 0.0
    %1190 = vmatmul.mubr.f32.gmra.mxu0 %v330
    %v1191 = vpop.f32.mrf.mxu0
    %v1192 = vadd.f32 %v290, %v1191
    %v1193 = vpop.f32.mrf.mxu0
    %1194 = vmatprep.mubr.f32.mxu0 0.0
    %1195 = vmatmul.mubr.f32.gmra.mxu0 %v333
    %v1196 = vpop.f32.mrf.mxu0
    %v1197 = vadd.f32 %v290, %v1196
    %v1198 = vpop.f32.mrf.mxu0
    %1199 = vmatprep.mubr.f32.mxu0 0.0
    %1200 = vmatmul.mubr.f32.gmra.mxu0 %v336
    %v1201 = vpop.f32.mrf.mxu0
    %v1202 = vadd.f32 %v290, %v1201
    %v1203 = vpop.f32.mrf.mxu0
    %1204 = vmatprep.mubr.f32.mxu0 0.0
    %1205 = vmatmul.mubr.f32.gmra.mxu0 %v339
    %v1206 = vpop.f32.mrf.mxu0
    %v1207 = vadd.f32 %v290, %v1206
    %v1208 = vpop.f32.mrf.mxu0
    %1209 = vmatprep.mubr.f32.mxu0 0.0
    %1210 = vmatmul.mubr.f32.gmra.mxu0 %v342
    %v1211 = vpop.f32.mrf.mxu0
    %v1212 = vadd.f32 %v290, %v1211
    %v1213 = vpop.f32.mrf.mxu0
    %1214 = vmatprep.mubr.f32.mxu0 0.0
    %1215 = vmatmul.mubr.f32.gmra.mxu0 %v345
    %v1216 = vpop.f32.mrf.mxu0
    %v1217 = vadd.f32 %v290, %v1216
    %v1218 = vpop.f32.mrf.mxu0
    %1219 = vmatprep.mubr.f32.mxu0 0.0
    %1220 = vmatmul.mubr.f32.gmra.mxu0 %v348
    %v1221 = vpop.f32.mrf.mxu0
    %v1222 = vadd.f32 %v290, %v1221
    %v1223 = vpop.f32.mrf.mxu0
    %1224 = vmatprep.mubr.f32.mxu0 0.0
    %1225 = vmatmul.mubr.f32.gmra.mxu0 %v351
    %v1226 = vpop.f32.mrf.mxu0
    %v1227 = vadd.f32 %v290, %v1226
    %v1228 = vpop.f32.mrf.mxu0
    %1229 = vmatprep.mubr.f32.mxu0 0.0
    %1230 = vmatmul.mubr.f32.gmra.mxu0 %v354
    %v1231 = vpop.f32.mrf.mxu0
    %v1232 = vadd.f32 %v290, %v1231
    %v1233 = vpop.f32.mrf.mxu0
    %1234 = vmatprep.mubr.f32.mxu0 0.0
    %1235 = vmatmul.mubr.f32.gmra.mxu0 %v357
    %v1236 = vpop.f32.mrf.mxu0
    %v1237 = vadd.f32 %v290, %v1236
    %v1238 = vpop.f32.mrf.mxu0
    %1239 = vmatprep.mubr.f32.mxu0 0.0
    %1240 = vmatmul.mubr.f32.gmra.mxu0 %v360
    %v1241 = vpop.f32.mrf.mxu0
    %v1242 = vadd.f32 %v290, %v1241
    %v1243 = vpop.f32.mrf.mxu0
    %1244 = vmatprep.mubr.f32.mxu0 0.0
    %1245 = vmatmul.mubr.f32.gmra.mxu0 %v363
    %v1246 = vpop.f32.mrf.mxu0
    %v1247 = vadd.f32 %v290, %v1246
    %v1248 = vpop.f32.mrf.mxu0
    %1249 = vmatprep.mubr.f32.mxu0 0.0
    %1250 = vmatmul.mubr.f32.gmra.mxu0 %v366
    %v1251 = vpop.f32.mrf.mxu0
    %v1252 = vadd.f32 %v290, %v1251
    %v1253 = vpop.f32.mrf.mxu0
    %1254 = vmatprep.mubr.f32.mxu0 0.0
    %1255 = vmatmul.mubr.f32.gmra.mxu0 %v369
    %v1256 = vpop.f32.mrf.mxu0
    %v1257 = vadd.f32 %v290, %v1256
    %v1258 = vpop.f32.mrf.mxu0
    %1259 = vmatprep.mubr.f32.mxu0 0.0
    %1260 = vmatmul.mubr.f32.gmra.mxu0 %v372
    %v1261 = vpop.f32.mrf.mxu0
    %v1262 = vadd.f32 %v290, %v1261
    %v1263 = vpop.f32.mrf.mxu0
    %1264 = vmatprep.mubr.f32.mxu0 0.0
    %1265 = vmatmul.mubr.f32.gmra.mxu0 %v375
    %v1266 = vpop.f32.mrf.mxu0
    %v1267 = vadd.f32 %v290, %v1266
    %v1268 = vpop.f32.mrf.mxu0
    %1269 = vmatprep.mubr.f32.mxu0 0.0
    %1270 = vmatmul.mubr.f32.gmra.mxu0 %v378
    %v1271 = vpop.f32.mrf.mxu0
    %v1272 = vadd.f32 %v290, %v1271
    %v1273 = vpop.f32.mrf.mxu0
    %1274 = vmatprep.mubr.f32.mxu0 0.0
    %1275 = vmatmul.mubr.f32.gmra.mxu0 %v381
    %v1276 = vpop.f32.mrf.mxu0
    %v1277 = vadd.f32 %v290, %v1276
    %v1278 = vpop.f32.mrf.mxu0
    %1279 = vmatprep.mubr.f32.mxu0 0.0
    %1280 = vmatmul.mubr.f32.gmra.mxu0 %v384
    %v1281 = vpop.f32.mrf.mxu0
    %v1282 = vadd.f32 %v290, %v1281
    %v1283 = vpop.f32.mrf.mxu0
    %1284 = vmatprep.mubr.f32.mxu0 0.0
    %1285 = vmatmul.mubr.f32.gmra.mxu0 %v387
    %v1286 = vpop.f32.mrf.mxu0
    %v1287 = vadd.f32 %v290, %v1286
    %v1288 = vpop.f32.mrf.mxu0
    %1289 = vmatprep.mubr.f32.mxu0 0.0
    %1290 = vmatmul.mubr.f32.gmra.mxu0 %v390
    %v1291 = vpop.f32.mrf.mxu0
    %v1292 = vadd.f32 %v290, %v1291
    %v1293 = vpop.f32.mrf.mxu0
    %1294 = vmatprep.mubr.f32.mxu0 0.0
    %1295 = vmatmul.mubr.f32.gmra.mxu0 %v393
    %v1296 = vpop.f32.mrf.mxu0
    %v1297 = vadd.f32 %v290, %v1296
    %v1298 = vpop.f32.mrf.mxu0
    %1299 = vmatprep.mubr.f32.mxu0 0.0
    %1300 = vmatmul.mubr.f32.gmra.mxu0 %v396
    %v1301 = vpop.f32.mrf.mxu0
    %v1302 = vadd.f32 %v290, %v1301
    %v1303 = vpop.f32.mrf.mxu0
    %1304 = vmatprep.mubr.f32.mxu0 0.0
    %1305 = vmatmul.mubr.f32.gmra.mxu0 %v399
    %v1306 = vpop.f32.mrf.mxu0
    %v1307 = vadd.f32 %v290, %v1306
    %v1308 = vpop.f32.mrf.mxu0
    %1309 = vmatprep.mubr.f32.mxu0 0.0
    %1310 = vmatmul.mubr.f32.gmra.mxu0 %v402
    %v1311 = vpop.f32.mrf.mxu0
    %v1312 = vadd.f32 %v290, %v1311
    %v1313 = vpop.f32.mrf.mxu0
    %1314 = vmatprep.mubr.f32.mxu0 0.0
    %1315 = vmatmul.mubr.f32.gmra.mxu0 %v405
    %v1316 = vpop.f32.mrf.mxu0
    %v1317 = vadd.f32 %v290, %v1316
    %v1318 = vpop.f32.mrf.mxu0
    %1319 = vmatprep.mubr.f32.mxu0 0.0
    %1320 = vmatmul.mubr.f32.gmra.mxu0 %v408
    %v1321 = vpop.f32.mrf.mxu0
    %v1322 = vadd.f32 %v290, %v1321
    %v1323 = vpop.f32.mrf.mxu0
    %1324 = vmatprep.mubr.f32.mxu0 0.0
    %1325 = vmatmul.mubr.f32.gmra.mxu0 %v411
    %v1326 = vpop.f32.mrf.mxu0
    %v1327 = vadd.f32 %v290, %v1326
    %v1328 = vpop.f32.mrf.mxu0
    %1329 = vmatprep.mubr.f32.mxu0 0.0
    %1330 = vmatmul.mubr.f32.gmra.mxu0 %v414
    %v1331 = vpop.f32.mrf.mxu0
    %v1332 = vadd.f32 %v290, %v1331
    %v1333 = vpop.f32.mrf.mxu0
    %1334 = vmatprep.mubr.f32.mxu0 0.0
    %1335 = vmatmul.mubr.f32.gmra.mxu0 %v417
    %v1336 = vpop.f32.mrf.mxu0
    %v1337 = vadd.f32 %v290, %v1336
    %v1338 = vpop.f32.mrf.mxu0
    %1339 = vmatprep.mubr.f32.mxu0 0.0
    %1340 = vmatmul.mubr.f32.gmra.mxu0 %v420
    %v1341 = vpop.f32.mrf.mxu0
    %v1342 = vadd.f32 %v290, %v1341
    %v1343 = vpop.f32.mrf.mxu0
    %1344 = vmatprep.mubr.f32.mxu0 0.0
    %1345 = vmatmul.mubr.f32.gmra.mxu0 %v423
    %v1346 = vpop.f32.mrf.mxu0
    %v1347 = vadd.f32 %v290, %v1346
    %v1348 = vpop.f32.mrf.mxu0
    %1349 = vmatprep.mubr.f32.mxu0 0.0
    %1350 = vmatmul.mubr.f32.gmra.mxu0 %v426
    %v1351 = vpop.f32.mrf.mxu0
    %v1352 = vadd.f32 %v290, %v1351
    %v1353 = vpop.f32.mrf.mxu0
    %1354 = vmatprep.mubr.f32.mxu0 0.0
    %1355 = vmatmul.mubr.f32.gmra.mxu0 %v429
    %v1356 = vpop.f32.mrf.mxu0
    %v1357 = vadd.f32 %v290, %v1356
    %v1358 = vpop.f32.mrf.mxu0
    %1359 = vmatprep.mubr.f32.mxu0 0.0
    %1360 = vmatmul.mubr.f32.gmra.mxu0 %v432
    %v1361 = vpop.f32.mrf.mxu0
    %v1362 = vadd.f32 %v290, %v1361
    %v1363 = vpop.f32.mrf.mxu0
    %1364 = vmatprep.mubr.f32.mxu0 0.0
    %1365 = vmatmul.mubr.f32.gmra.mxu0 %v435
    %v1366 = vpop.f32.mrf.mxu0
    %v1367 = vadd.f32 %v290, %v1366
    %v1368 = vpop.f32.mrf.mxu0
    %1369 = vmatprep.mubr.f32.mxu0 0.0
    %1370 = vmatmul.mubr.f32.gmra.mxu0 %v438
    %v1371 = vpop.f32.mrf.mxu0
    %v1372 = vadd.f32 %v290, %v1371
    %v1373 = vpop.f32.mrf.mxu0
    %1374 = vmatprep.mubr.f32.mxu0 0.0
    %1375 = vmatmul.mubr.f32.gmra.mxu0 %v441
    %v1376 = vpop.f32.mrf.mxu0
    %v1377 = vadd.f32 %v290, %v1376
    %v1378 = vpop.f32.mrf.mxu0
    %1379 = vmatprep.mubr.f32.mxu0 0.0
    %1380 = vmatmul.mubr.f32.gmra.mxu0 %v444
    %v1381 = vpop.f32.mrf.mxu0
    %v1382 = vadd.f32 %v290, %v1381
    %v1383 = vpop.f32.mrf.mxu0
    %1384 = vmatprep.mubr.f32.mxu0 0.0
    %1385 = vmatmul.mubr.f32.gmra.mxu0 %v447
    %v1386 = vpop.f32.mrf.mxu0
    %v1387 = vadd.f32 %v290, %v1386
    %v1388 = vpop.f32.mrf.mxu0
    %1389 = vmatprep.mubr.f32.mxu0 0.0
    %1390 = vmatmul.mubr.f32.gmra.mxu0 %v450
    %v1391 = vpop.f32.mrf.mxu0
    %v1392 = vadd.f32 %v290, %v1391
    %v1393 = vpop.f32.mrf.mxu0
    %1394 = vmatprep.mubr.f32.mxu0 0.0
    %1395 = vmatmul.mubr.f32.gmra.mxu0 %v453
    %v1396 = vpop.f32.mrf.mxu0
    %v1397 = vadd.f32 %v290, %v1396
    %v1398 = vpop.f32.mrf.mxu0
    %1399 = vmatprep.mubr.f32.mxu0 0.0
    %1400 = vmatmul.mubr.f32.gmra.mxu0 %v456
    %v1401 = vpop.f32.mrf.mxu0
    %v1402 = vadd.f32 %v290, %v1401
    %v1403 = vpop.f32.mrf.mxu0
    %1404 = vmatprep.mubr.f32.mxu0 0.0
    %1405 = vmatmul.mubr.f32.gmra.mxu0 %v459
    %v1406 = vpop.f32.mrf.mxu0
    %v1407 = vadd.f32 %v290, %v1406
    %v1408 = vpop.f32.mrf.mxu0
    %1409 = vmatprep.mubr.f32.mxu0 0.0
    %1410 = vmatmul.mubr.f32.gmra.mxu0 %v462
    %v1411 = vpop.f32.mrf.mxu0
    %v1412 = vadd.f32 %v290, %v1411
    %v1413 = vpop.f32.mrf.mxu0
    %1414 = vmatprep.mubr.f32.mxu0 0.0
    %1415 = vmatmul.mubr.f32.gmra.mxu0 %v465
    %v1416 = vpop.f32.mrf.mxu0
    %v1417 = vadd.f32 %v290, %v1416
    %v1418 = vpop.f32.mrf.mxu0
    %1419 = vmatprep.mubr.f32.mxu0 0.0
    %1420 = vmatmul.mubr.f32.gmra.mxu0 %v468
    %v1421 = vpop.f32.mrf.mxu0
    %v1422 = vadd.f32 %v290, %v1421
    %v1423 = vpop.f32.mrf.mxu0
    %1424 = vmatprep.mubr.f32.mxu0 0.0
    %1425 = vmatmul.mubr.f32.gmra.mxu0 %v471
    %v1426 = vpop.f32.mrf.mxu0
    %v1427 = vadd.f32 %v290, %v1426
    %v1428 = vpop.f32.mrf.mxu0
    %1429 = vmatprep.mubr.f32.mxu0 0.0
    %1430 = vmatmul.mubr.f32.gmra.mxu0 %v474
    %v1431 = vpop.f32.mrf.mxu0
    %v1432 = vadd.f32 %v290, %v1431
    %v1433 = vpop.f32.mrf.mxu0
    %1434 = vmatprep.mubr.f32.mxu0 0.0
    %1435 = vmatmul.mubr.f32.gmra.mxu0 %v477
    %v1436 = vpop.f32.mrf.mxu0
    %v1437 = vadd.f32 %v290, %v1436
    %v1438 = vpop.f32.mrf.mxu0
    %1439 = vmatprep.mubr.f32.mxu0 0.0
    %1440 = vmatmul.mubr.f32.gmra.mxu0 %v480
    %v1441 = vpop.f32.mrf.mxu0
    %v1442 = vadd.f32 %v290, %v1441
    %v1443 = vpop.f32.mrf.mxu0
    %1444 = vmatprep.mubr.f32.mxu0 0.0
    %1445 = vmatmul.mubr.f32.gmra.mxu0 %v483
    %v1446 = vpop.f32.mrf.mxu0
    %v1447 = vadd.f32 %v290, %v1446
    %v1448 = vpop.f32.mrf.mxu0
    %1449 = vmatprep.mubr.f32.mxu0 0.0
    %1450 = vmatmul.mubr.f32.gmra.mxu0 %v486
    %v1451 = vpop.f32.mrf.mxu0
    %v1452 = vadd.f32 %v290, %v1451
    %v1453 = vpop.f32.mrf.mxu0
    %1454 = vmatprep.mubr.f32.mxu0 0.0
    %1455 = vmatmul.mubr.f32.gmra.mxu0 %v489
    %v1456 = vpop.f32.mrf.mxu0
    %v1457 = vadd.f32 %v290, %v1456
    %v1458 = vpop.f32.mrf.mxu0
    %1459 = vmatprep.mubr.f32.mxu0 0.0
    %1460 = vmatmul.mubr.f32.gmra.mxu0 %v492
    %v1461 = vpop.f32.mrf.mxu0
    %v1462 = vadd.f32 %v290, %v1461
    %v1463 = vpop.f32.mrf.mxu0
    %1464 = vmatprep.mubr.f32.mxu0 0.0
    %1465 = vmatmul.mubr.f32.gmra.mxu0 %v495
    %v1466 = vpop.f32.mrf.mxu0
    %v1467 = vadd.f32 %v290, %v1466
    %v1468 = vpop.f32.mrf.mxu0
    %1469 = vmatprep.mubr.f32.mxu0 0.0
    %1470 = vmatmul.mubr.f32.gmra.mxu0 %v498
    %v1471 = vpop.f32.mrf.mxu0
    %v1472 = vadd.f32 %v290, %v1471
    %v1473 = vpop.f32.mrf.mxu0
    %1474 = vmatprep.mubr.f32.mxu0 0.0
    %1475 = vmatmul.mubr.f32.gmra.mxu0 %v501
    %v1476 = vpop.f32.mrf.mxu0
    %v1477 = vadd.f32 %v290, %v1476
    %v1478 = vpop.f32.mrf.mxu0
    %1479 = vmatprep.mubr.f32.mxu0 0.0
    %1480 = vmatmul.mubr.f32.gmra.mxu0 %v504
    %v1481 = vpop.f32.mrf.mxu0
    %v1482 = vadd.f32 %v290, %v1481
    %v1483 = vpop.f32.mrf.mxu0
    %1484 = vmatprep.mubr.f32.mxu0 0.0
    %1485 = vmatmul.mubr.f32.gmra.mxu0 %v507
    %v1486 = vpop.f32.mrf.mxu0
    %v1487 = vadd.f32 %v290, %v1486
    %v1488 = vpop.f32.mrf.mxu0
    %1489 = vmatprep.mubr.f32.mxu0 0.0
    %1490 = vmatmul.mubr.f32.gmra.mxu0 %v510
    %v1491 = vpop.f32.mrf.mxu0
    %v1492 = vadd.f32 %v290, %v1491
    %v1493 = vpop.f32.mrf.mxu0
    %1494 = vmatprep.mubr.f32.mxu0 0.0
    %1495 = vmatmul.mubr.f32.gmra.mxu0 %v513
    %v1496 = vpop.f32.mrf.mxu0
    %v1497 = vadd.f32 %v290, %v1496
    %v1498 = vpop.f32.mrf.mxu0
    %1499 = vmatprep.mubr.f32.mxu0 0.0
    %1500 = vmatmul.mubr.f32.gmra.mxu0 %v516
    %v1501 = vpop.f32.mrf.mxu0
    %v1502 = vadd.f32 %v290, %v1501
    %v1503 = vpop.f32.mrf.mxu0
    %1504 = vmatprep.mubr.f32.mxu0 0.0
    %1505 = vmatmul.mubr.f32.gmra.mxu0 %v519
    %v1506 = vpop.f32.mrf.mxu0
    %v1507 = vadd.f32 %v290, %v1506
    %v1508 = vpop.f32.mrf.mxu0
    %1509 = vmatprep.mubr.f32.mxu0 0.0
    %1510 = vmatmul.mubr.f32.gmra.mxu0 %v522
    %v1511 = vpop.f32.mrf.mxu0
    %v1512 = vadd.f32 %v290, %v1511
    %v1513 = vpop.f32.mrf.mxu0
    %1514 = vmatprep.mubr.f32.mxu0 0.0
    %1515 = vmatmul.mubr.f32.gmra.mxu0 %v525
    %v1516 = vpop.f32.mrf.mxu0
    %v1517 = vadd.f32 %v290, %v1516
    %v1518 = vpop.f32.mrf.mxu0
    %1519 = vmatprep.mubr.f32.mxu0 0.0
    %1520 = vmatmul.mubr.f32.gmra.mxu0 %v528
    %v1521 = vpop.f32.mrf.mxu0
    %v1522 = vadd.f32 %v290, %v1521
    %v1523 = vpop.f32.mrf.mxu0
    %1524 = vmatprep.mubr.f32.mxu0 0.0
    %1525 = vmatmul.mubr.f32.gmra.mxu0 %v531
    %v1526 = vpop.f32.mrf.mxu0
    %v1527 = vadd.f32 %v290, %v1526
    %v1528 = vpop.f32.mrf.mxu0
    %1529 = vmatprep.mubr.f32.mxu0 0.0
    %1530 = vmatmul.mubr.f32.gmra.mxu0 %v534
    %v1531 = vpop.f32.mrf.mxu0
    %v1532 = vadd.f32 %v290, %v1531
    %v1533 = vpop.f32.mrf.mxu0
    %1534 = vmatprep.mubr.f32.mxu0 0.0
    %1535 = vmatmul.mubr.f32.gmra.mxu0 %v537
    %v1536 = vpop.f32.mrf.mxu0
    %v1537 = vadd.f32 %v290, %v1536
    %v1538 = vpop.f32.mrf.mxu0
    %1539 = vmatprep.mubr.f32.mxu0 0.0
    %1540 = vmatmul.mubr.f32.gmra.mxu0 %v540
    %v1541 = vpop.f32.mrf.mxu0
    %v1542 = vadd.f32 %v290, %v1541
    %v1543 = vpop.f32.mrf.mxu0
    %1544 = vmatprep.mubr.f32.mxu0 0.0
    %1545 = vmatmul.mubr.f32.gmra.mxu0 %v543
    %v1546 = vpop.f32.mrf.mxu0
    %v1547 = vadd.f32 %v290, %v1546
    %v1548 = vpop.f32.mrf.mxu0
    %1549 = vmatprep.mubr.f32.mxu0 0.0
    %1550 = vmatmul.mubr.f32.gmra.mxu0 %v546
    %v1551 = vpop.f32.mrf.mxu0
    %v1552 = vadd.f32 %v290, %v1551
    %v1553 = vpop.f32.mrf.mxu0
    %1554 = vmatprep.mubr.f32.mxu0 0.0
    %1555 = vmatmul.mubr.f32.gmra.mxu0 %v549
    %v1556 = vpop.f32.mrf.mxu0
    %v1557 = vadd.f32 %v290, %v1556
    %v1558 = vpop.f32.mrf.mxu0
    %1559 = vmatprep.mubr.f32.mxu0 0.0
    %1560 = vmatmul.mubr.f32.gmra.mxu0 %v552
    %v1561 = vpop.f32.mrf.mxu0
    %v1562 = vadd.f32 %v290, %v1561
    %v1563 = vpop.f32.mrf.mxu0
    %1564 = vmatprep.mubr.f32.mxu0 0.0
    %1565 = vmatmul.mubr.f32.gmra.mxu0 %v555
    %v1566 = vpop.f32.mrf.mxu0
    %v1567 = vadd.f32 %v290, %v1566
    %v1568 = vpop.f32.mrf.mxu0
    %1569 = vmatprep.mubr.f32.mxu0 0.0
    %1570 = vmatmul.mubr.f32.gmra.mxu0 %v558
    %v1571 = vpop.f32.mrf.mxu0
    %v1572 = vadd.f32 %v290, %v1571
    %v1573 = vpop.f32.mrf.mxu0
    %1574 = vmatprep.mubr.f32.mxu0 0.0
    %1575 = vmatmul.mubr.f32.gmra.mxu0 %v561
    %v1576 = vpop.f32.mrf.mxu0
    %v1577 = vadd.f32 %v290, %v1576
    %v1578 = vpop.f32.mrf.mxu0
    %1579 = vmatprep.mubr.f32.mxu0 0.0
    %1580 = vmatmul.mubr.f32.gmra.mxu0 %v564
    %v1581 = vpop.f32.mrf.mxu0
    %v1582 = vadd.f32 %v290, %v1581
    %v1583 = vpop.f32.mrf.mxu0
    %1584 = vmatprep.mubr.f32.mxu0 0.0
    %1585 = vmatmul.mubr.f32.gmra.mxu0 %v567
    %v1586 = vpop.f32.mrf.mxu0
    %v1587 = vadd.f32 %v290, %v1586
    %v1588 = vpop.f32.mrf.mxu0
    %1589 = vmatprep.mubr.f32.mxu0 0.0
    %1590 = vmatmul.mubr.f32.gmra.mxu0 %v570
    %v1591 = vpop.f32.mrf.mxu0
    %v1592 = vadd.f32 %v290, %v1591
    %v1593 = vpop.f32.mrf.mxu0
    %1594 = vmatprep.mubr.f32.mxu0 0.0
    %1595 = vmatmul.mubr.f32.gmra.mxu0 %v573
    %v1596 = vpop.f32.mrf.mxu0
    %v1597 = vadd.f32 %v290, %v1596
    %v1598 = vpop.f32.mrf.mxu0
    %1599 = vmatprep.mubr.f32.mxu0 0.0
    %1600 = vmatmul.mubr.f32.gmra.mxu0 %v576
    %v1601 = vpop.f32.mrf.mxu0
    %v1602 = vadd.f32 %v290, %v1601
    %v1603 = vpop.f32.mrf.mxu0
    %1604 = vmatprep.mubr.f32.mxu0 0.0
    %1605 = vmatmul.mubr.f32.gmra.mxu0 %v579
    %v1606 = vpop.f32.mrf.mxu0
    %v1607 = vadd.f32 %v290, %v1606
    %v1608 = vpop.f32.mrf.mxu0
    %1609 = vmatprep.mubr.f32.mxu0 0.0
    %1610 = vmatmul.mubr.f32.gmra.mxu0 %v582
    %v1611 = vpop.f32.mrf.mxu0
    %v1612 = vadd.f32 %v290, %v1611
    %v1613 = vpop.f32.mrf.mxu0
    %1614 = vmatprep.mubr.f32.mxu0 0.0
    %1615 = vmatmul.mubr.f32.gmra.mxu0 %v585
    %v1616 = vpop.f32.mrf.mxu0
    %v1617 = vadd.f32 %v290, %v1616
    %v1618 = vpop.f32.mrf.mxu0
    %1619 = vmatprep.mubr.f32.mxu0 0.0
    %1620 = vmatmul.mubr.f32.gmra.mxu0 %v588
    %v1621 = vpop.f32.mrf.mxu0
    %v1622 = vadd.f32 %v290, %v1621
    %v1623 = vpop.f32.mrf.mxu0
    %1624 = vmatprep.mubr.f32.mxu0 0.0
    %1625 = vmatmul.mubr.f32.gmra.mxu0 %v591
    %v1626 = vpop.f32.mrf.mxu0
    %v1627 = vadd.f32 %v290, %v1626
    %v1628 = vpop.f32.mrf.mxu0
    %1629 = vmatprep.mubr.f32.mxu0 0.0
    %1630 = vmatmul.mubr.f32.gmra.mxu0 %v594
    %v1631 = vpop.f32.mrf.mxu0
    %v1632 = vadd.f32 %v290, %v1631
    %v1633 = vpop.f32.mrf.mxu0
    %1634 = vmatprep.mubr.f32.mxu0 0.0
    %1635 = vmatmul.mubr.f32.gmra.mxu0 %v597
    %v1636 = vpop.f32.mrf.mxu0
    %v1637 = vadd.f32 %v290, %v1636
    %v1638 = vpop.f32.mrf.mxu0
    %1639 = vmatprep.mubr.f32.mxu0 0.0
    %1640 = vmatmul.mubr.f32.gmra.mxu0 %v600
    %v1641 = vpop.f32.mrf.mxu0
    %v1642 = vadd.f32 %v290, %v1641
    %v1643 = vpop.f32.mrf.mxu0
    %1644 = vmatprep.mubr.f32.mxu0 0.0
    %1645 = vmatmul.mubr.f32.gmra.mxu0 %v603
    %v1646 = vpop.f32.mrf.mxu0
    %v1647 = vadd.f32 %v290, %v1646
    %v1648 = vpop.f32.mrf.mxu0
    %1649 = vmatprep.mubr.f32.mxu0 0.0
    %1650 = vmatmul.mubr.f32.gmra.mxu0 %v606
    %v1651 = vpop.f32.mrf.mxu0
    %v1652 = vadd.f32 %v290, %v1651
    %v1653 = vpop.f32.mrf.mxu0
    %1654 = vmatprep.mubr.f32.mxu0 0.0
    %1655 = vmatmul.mubr.f32.gmra.mxu0 %v609
    %v1656 = vpop.f32.mrf.mxu0
    %v1657 = vadd.f32 %v290, %v1656
    %v1658 = vpop.f32.mrf.mxu0
    %1659 = vmatprep.mubr.f32.mxu0 0.0
    %1660 = vmatmul.mubr.f32.gmra.mxu0 %v612
    %v1661 = vpop.f32.mrf.mxu0
    %v1662 = vadd.f32 %v290, %v1661
    %v1663 = vpop.f32.mrf.mxu0
    %1664 = vmatprep.mubr.f32.mxu0 0.0
    %1665 = vmatmul.mubr.f32.gmra.mxu0 %v615
    %v1666 = vpop.f32.mrf.mxu0
    %v1667 = vadd.f32 %v290, %v1666
    %v1668 = vpop.f32.mrf.mxu0
    %1669 = vmatprep.mubr.f32.mxu0 0.0
    %1670 = vmatmul.mubr.f32.gmra.mxu0 %v618
    %v1671 = vpop.f32.mrf.mxu0
    %v1672 = vadd.f32 %v290, %v1671
    %v1673 = vpop.f32.mrf.mxu0
    %1674 = vmatprep.mubr.f32.mxu0 0.0
    %1675 = vmatmul.mubr.f32.gmra.mxu0 %v621
    %v1676 = vpop.f32.mrf.mxu0
    %v1677 = vadd.f32 %v290, %v1676
    %v1678 = vpop.f32.mrf.mxu0
    %1679 = vmatprep.mubr.f32.mxu0 0.0
    %1680 = vmatmul.mubr.f32.gmra.mxu0 %v624
    %v1681 = vpop.f32.mrf.mxu0
    %v1682 = vadd.f32 %v290, %v1681
    %v1683 = vpop.f32.mrf.mxu0
    %1684 = vmatprep.mubr.f32.mxu0 0.0
    %1685 = vmatmul.mubr.f32.gmra.mxu0 %v627
    %v1686 = vpop.f32.mrf.mxu0
    %v1687 = vadd.f32 %v290, %v1686
    %v1688 = vpop.f32.mrf.mxu0
    %1689 = vmatprep.mubr.f32.mxu0 0.0
    %1690 = vmatmul.mubr.f32.gmra.mxu0 %v630
    %v1691 = vpop.f32.mrf.mxu0
    %v1692 = vadd.f32 %v290, %v1691
    %v1693 = vpop.f32.mrf.mxu0
    %1694 = vmatprep.mubr.f32.mxu0 0.0
    %1695 = vmatmul.mubr.f32.gmra.mxu0 %v633
    %v1696 = vpop.f32.mrf.mxu0
    %v1697 = vadd.f32 %v290, %v1696
    %v1698 = vpop.f32.mrf.mxu0
    %1699 = vmatprep.mubr.f32.mxu0 0.0
    %1700 = vmatmul.mubr.f32.gmra.mxu0 %v636
    %v1701 = vpop.f32.mrf.mxu0
    %v1702 = vadd.f32 %v290, %v1701
    %v1703 = vpop.f32.mrf.mxu0
    %1704 = vmatprep.mubr.f32.mxu0 0.0
    %1705 = vmatmul.mubr.f32.gmra.mxu0 %v639
    %v1706 = vpop.f32.mrf.mxu0
    %v1707 = vadd.f32 %v290, %v1706
    %v1708 = vpop.f32.mrf.mxu0
    %1709 = vmatprep.mubr.f32.mxu0 0.0
    %1710 = vmatmul.mubr.f32.gmra.mxu0 %v642
    %v1711 = vpop.f32.mrf.mxu0
    %v1712 = vadd.f32 %v290, %v1711
    %v1713 = vpop.f32.mrf.mxu0
    %1714 = vmatprep.mubr.f32.mxu0 0.0
    %1715 = vmatmul.mubr.f32.gmra.mxu0 %v645
    %v1716 = vpop.f32.mrf.mxu0
    %v1717 = vadd.f32 %v290, %v1716
    %v1718 = vpop.f32.mrf.mxu0
    %1719 = vmatprep.mubr.f32.mxu0 0.0
    %1720 = vmatmul.mubr.f32.gmra.mxu0 %v648
    %v1721 = vpop.f32.mrf.mxu0
    %v1722 = vadd.f32 %v290, %v1721
    %v1723 = vpop.f32.mrf.mxu0
    %1724 = vmatprep.mubr.f32.mxu0 0.0
    %1725 = vmatmul.mubr.f32.gmra.mxu0 %v651
    %v1726 = vpop.f32.mrf.mxu0
    %v1727 = vadd.f32 %v290, %v1726
    %v1728 = vpop.f32.mrf.mxu0
    %1729 = vmatprep.mubr.f32.mxu0 0.0
    %1730 = vmatmul.mubr.f32.gmra.mxu0 %v654
    %v1731 = vpop.f32.mrf.mxu0
    %v1732 = vadd.f32 %v290, %v1731
    %v1733 = vpop.f32.mrf.mxu0
    %1734 = vmatprep.mubr.f32.mxu0 0.0
    %1735 = vmatmul.mubr.f32.gmra.mxu0 %v657
    %v1736 = vpop.f32.mrf.mxu0
    %v1737 = vadd.f32 %v290, %v1736
    %v1738 = vpop.f32.mrf.mxu0
    %1739 = vmatprep.mubr.f32.mxu0 0.0
    %1740 = vmatmul.mubr.f32.gmra.mxu0 %v660
    %v1741 = vpop.f32.mrf.mxu0
    %v1742 = vadd.f32 %v290, %v1741
    %v1743 = vpop.f32.mrf.mxu0
    %1744 = vmatprep.mubr.f32.mxu0 0.0
    %1745 = vmatmul.mubr.f32.gmra.mxu0 %v663
    %v1746 = vpop.f32.mrf.mxu0
    %v1747 = vadd.f32 %v290, %v1746
    %v1748 = vpop.f32.mrf.mxu0
    %1749 = vmatprep.mubr.f32.mxu0 0.0
    %1750 = vmatmul.mubr.f32.gmra.mxu0 %v666
    %v1751 = vpop.f32.mrf.mxu0
    %v1752 = vadd.f32 %v290, %v1751
    %v1753 = vpop.f32.mrf.mxu0
    %1754 = vmatprep.mubr.f32.mxu0 0.0
    %1755 = vmatmul.mubr.f32.gmra.mxu0 %v669
    %v1756 = vpop.f32.mrf.mxu0
    %v1757 = vadd.f32 %v290, %v1756
    %v1758 = vpop.f32.mrf.mxu0
    %1759 = vmatprep.mubr.f32.mxu0 0.0
    %1760 = vmatmul.mubr.f32.gmra.mxu0 %v672
    %v1761 = vpop.f32.mrf.mxu0
    %v1762 = vadd.f32 %v290, %v1761
    %v1763 = vpop.f32.mrf.mxu0
    %1764 = vmatprep.mubr.f32.mxu0 0.0
    %1765 = vmatmul.mubr.f32.gmra.mxu0 %v675
    %v1766 = vpop.f32.mrf.mxu0
    %v1767 = vadd.f32 %v290, %v1766
    %v1768 = vpop.f32.mrf.mxu0
    %1769 = vmatprep.mubr.f32.mxu0 0.0
    %1770 = vmatmul.mubr.f32.gmra.mxu0 %v678
    %v1771 = vpop.f32.mrf.mxu0
    %v1772 = vadd.f32 %v290, %v1771
    %v1773 = vpop.f32.mrf.mxu0
    %1774 = vmatprep.mubr.f32.mxu0 0.0
    %1775 = vmatmul.mubr.f32.gmra.mxu0 %v681
    %v1776 = vpop.f32.mrf.mxu0
    %v1777 = vadd.f32 %v290, %v1776
    %v1778 = vpop.f32.mrf.mxu0
    %1779 = vmatprep.mubr.f32.mxu0 0.0
    %1780 = vmatmul.mubr.f32.gmra.mxu0 %v684
    %v1781 = vpop.f32.mrf.mxu0
    %v1782 = vadd.f32 %v290, %v1781
    %v1783 = vpop.f32.mrf.mxu0
    %1784 = vmatprep.mubr.f32.mxu0 0.0
    %1785 = vmatmul.mubr.f32.gmra.mxu0 %v687
    %v1786 = vpop.f32.mrf.mxu0
    %v1787 = vadd.f32 %v290, %v1786
    %v1788 = vpop.f32.mrf.mxu0
    %1789 = vmatprep.mubr.f32.mxu0 0.0
    %1790 = vmatmul.mubr.f32.gmra.mxu0 %v690
    %v1791 = vpop.f32.mrf.mxu0
    %v1792 = vadd.f32 %v290, %v1791
    %v1793 = vpop.f32.mrf.mxu0
    %1794 = vmatprep.mubr.f32.mxu0 0.0
    %1795 = vmatmul.mubr.f32.gmra.mxu0 %v693
    %v1796 = vpop.f32.mrf.mxu0
    %v1797 = vadd.f32 %v290, %v1796
    %v1798 = vpop.f32.mrf.mxu0
    %1799 = vmatprep.mubr.f32.mxu0 0.0
    %1800 = vmatmul.mubr.f32.gmra.mxu0 %v696
    %v1801 = vpop.f32.mrf.mxu0
    %v1802 = vadd.f32 %v290, %v1801
    %v1803 = vpop.f32.mrf.mxu0
    %1804 = vmatprep.mubr.f32.mxu0 0.0
    %1805 = vmatmul.mubr.f32.gmra.mxu0 %v699
    %v1806 = vpop.f32.mrf.mxu0
    %v1807 = vadd.f32 %v290, %v1806
    %v1808 = vpop.f32.mrf.mxu0
    %1809 = vmatprep.mubr.f32.mxu0 0.0
    %1810 = vmatmul.mubr.f32.gmra.mxu0 %v702
    %v1811 = vpop.f32.mrf.mxu0
    %v1812 = vadd.f32 %v290, %v1811
    %v1813 = vpop.f32.mrf.mxu0
    %1814 = vmatprep.mubr.f32.mxu0 0.0
    %1815 = vmatmul.mubr.f32.gmra.mxu0 %v705
    %v1816 = vpop.f32.mrf.mxu0
    %v1817 = vadd.f32 %v290, %v1816
    %v1818 = vpop.f32.mrf.mxu0
    %1819 = vmatprep.mubr.f32.mxu0 0.0
    %1820 = vmatmul.mubr.f32.gmra.mxu0 %v708
    %v1821 = vpop.f32.mrf.mxu0
    %v1822 = vadd.f32 %v290, %v1821
    %v1823 = vpop.f32.mrf.mxu0
    %1824 = vmatprep.mubr.f32.mxu0 0.0
    %1825 = vmatmul.mubr.f32.gmra.mxu0 %v711
    %v1826 = vpop.f32.mrf.mxu0
    %v1827 = vadd.f32 %v290, %v1826
    %v1828 = vpop.f32.mrf.mxu0
    %1829 = vmatprep.mubr.f32.mxu0 0.0
    %1830 = vmatmul.mubr.f32.gmra.mxu0 %v714
    %v1831 = vpop.f32.mrf.mxu0
    %v1832 = vadd.f32 %v290, %v1831
    %v1833 = vpop.f32.mrf.mxu0
    %1834 = vmatprep.mubr.f32.mxu0 0.0
    %1835 = vmatmul.mubr.f32.gmra.mxu0 %v717
    %v1836 = vpop.f32.mrf.mxu0
    %v1837 = vadd.f32 %v290, %v1836
    %v1838 = vpop.f32.mrf.mxu0
    %1839 = vmatprep.mubr.f32.mxu0 0.0
    %1840 = vmatmul.mubr.f32.gmra.mxu0 %v720
    %v1841 = vpop.f32.mrf.mxu0
    %v1842 = vadd.f32 %v290, %v1841
    %v1843 = vpop.f32.mrf.mxu0
    %1844 = vmatprep.mubr.f32.mxu0 0.0
    %1845 = vmatmul.mubr.f32.gmra.mxu0 %v723
    %v1846 = vpop.f32.mrf.mxu0
    %v1847 = vadd.f32 %v290, %v1846
    %v1848 = vpop.f32.mrf.mxu0
    %1849 = vmatprep.mubr.f32.mxu0 0.0
    %1850 = vmatmul.mubr.f32.gmra.mxu0 %v726
    %v1851 = vpop.f32.mrf.mxu0
    %v1852 = vadd.f32 %v290, %v1851
    %v1853 = vpop.f32.mrf.mxu0
    %1854 = vmatprep.mubr.f32.mxu0 0.0
    %1855 = vmatmul.mubr.f32.gmra.mxu0 %v729
    %v1856 = vpop.f32.mrf.mxu0
    %v1857 = vadd.f32 %v290, %v1856
    %v1858 = vpop.f32.mrf.mxu0
    %1859 = vmatprep.mubr.f32.mxu0 0.0
    %1860 = vmatmul.mubr.f32.gmra.mxu0 %v732
    %v1861 = vpop.f32.mrf.mxu0
    %v1862 = vadd.f32 %v290, %v1861
    %v1863 = vpop.f32.mrf.mxu0
    %1864 = vmatprep.mubr.f32.mxu0 0.0
    %1865 = vmatmul.mubr.f32.gmra.mxu0 %v735
    %v1866 = vpop.f32.mrf.mxu0
    %v1867 = vadd.f32 %v290, %v1866
    %v1868 = vpop.f32.mrf.mxu0
    %1869 = vmatprep.mubr.f32.mxu0 0.0
    %1870 = vmatmul.mubr.f32.gmra.mxu0 %v738
    %v1871 = vpop.f32.mrf.mxu0
    %v1872 = vadd.f32 %v290, %v1871
    %v1873 = vpop.f32.mrf.mxu0
    %1874 = vmatprep.mubr.f32.mxu0 0.0
    %1875 = vmatmul.mubr.f32.gmra.mxu0 %v741
    %v1876 = vpop.f32.mrf.mxu0
    %v1877 = vadd.f32 %v290, %v1876
    %v1878 = vpop.f32.mrf.mxu0
    %1879 = vmatprep.mubr.f32.mxu0 0.0
    %1880 = vmatmul.mubr.f32.gmra.mxu0 %v744
    %v1881 = vpop.f32.mrf.mxu0
    %v1882 = vadd.f32 %v290, %v1881
    %v1883 = vpop.f32.mrf.mxu0
    %1884 = vmatprep.mubr.f32.mxu0 0.0
    %1885 = vmatmul.mubr.f32.gmra.mxu0 %v747
    %v1886 = vpop.f32.mrf.mxu0
    %v1887 = vadd.f32 %v290, %v1886
    %v1888 = vpop.f32.mrf.mxu0
    %1889 = vmatprep.mubr.f32.mxu0 0.0
    %1890 = vmatmul.mubr.f32.gmra.mxu0 %v750
    %v1891 = vpop.f32.mrf.mxu0
    %v1892 = vadd.f32 %v290, %v1891
    %v1893 = vpop.f32.mrf.mxu0
    %1894 = vmatprep.mubr.f32.mxu0 0.0
    %1895 = vmatmul.mubr.f32.gmra.mxu0 %v753
    %v1896 = vpop.f32.mrf.mxu0
    %v1897 = vadd.f32 %v290, %v1896
    %v1898 = vpop.f32.mrf.mxu0
    %1899 = vmatprep.mubr.f32.mxu0 0.0
    %1900 = vmatmul.mubr.f32.gmra.mxu0 %v756
    %v1901 = vpop.f32.mrf.mxu0
    %v1902 = vadd.f32 %v290, %v1901
    %v1903 = vpop.f32.mrf.mxu0
    %1904 = vmatprep.mubr.f32.mxu0 0.0
    %1905 = vmatmul.mubr.f32.gmra.mxu0 %v759
    %v1906 = vpop.f32.mrf.mxu0
    %v1907 = vadd.f32 %v290, %v1906
    %v1908 = vpop.f32.mrf.mxu0
    %1909 = vmatprep.mubr.f32.mxu0 0.0
    %1910 = vmatmul.mubr.f32.gmra.mxu0 %v762
    %v1911 = vpop.f32.mrf.mxu0
    %v1912 = vadd.f32 %v290, %v1911
    %v1913 = vpop.f32.mrf.mxu0
    %1914 = vmatprep.mubr.f32.mxu0 0.0
    %1915 = vmatmul.mubr.f32.gmra.mxu0 %v765
    %v1916 = vpop.f32.mrf.mxu0
    %v1917 = vadd.f32 %v290, %v1916
    %v1918 = vpop.f32.mrf.mxu0
    %1919 = vmatprep.mubr.f32.mxu0 0.0
    %1920 = vmatmul.mubr.f32.gmra.mxu0 %v768
    %v1921 = vpop.f32.mrf.mxu0
    %v1922 = vadd.f32 %v290, %v1921
    %v1923 = vpop.f32.mrf.mxu0
    %1924 = vmatprep.mubr.f32.mxu0 0.0
    %1925 = vmatmul.mubr.f32.gmra.mxu0 %v771
    %v1926 = vpop.f32.mrf.mxu0
    %v1927 = vadd.f32 %v290, %v1926
    %v1928 = vpop.f32.mrf.mxu0
    %1929 = vmatprep.mubr.f32.mxu0 0.0
    %1930 = vmatmul.mubr.f32.gmra.mxu0 %v774
    %v1931 = vpop.f32.mrf.mxu0
    %v1932 = vadd.f32 %v290, %v1931
    %v1933 = vpop.f32.mrf.mxu0
    %1934 = vmatprep.mubr.f32.mxu0 0.0
    %1935 = vmatmul.mubr.f32.gmra.mxu0 %v777
    %v1936 = vpop.f32.mrf.mxu0
    %v1937 = vadd.f32 %v290, %v1936
    %v1938 = vpop.f32.mrf.mxu0
    %1939 = vmatprep.mubr.f32.mxu0 0.0
    %1940 = vmatmul.mubr.f32.gmra.mxu0 %v780
    %v1941 = vpop.f32.mrf.mxu0
    %v1942 = vadd.f32 %v290, %v1941
    %v1943 = vpop.f32.mrf.mxu0
    %1944 = vmatprep.mubr.f32.mxu0 0.0
    %1945 = vmatmul.mubr.f32.gmra.mxu0 %v783
    %v1946 = vpop.f32.mrf.mxu0
    %v1947 = vadd.f32 %v290, %v1946
    %v1948 = vpop.f32.mrf.mxu0
    %1949 = vmatprep.mubr.f32.mxu0 0.0
    %1950 = vmatmul.mubr.f32.gmra.mxu0 %v786
    %v1951 = vpop.f32.mrf.mxu0
    %v1952 = vadd.f32 %v290, %v1951
    %v1953 = vpop.f32.mrf.mxu0
    %1954 = vmatprep.mubr.f32.mxu0 0.0
    %1955 = vmatmul.mubr.f32.gmra.mxu0 %v789
    %v1956 = vpop.f32.mrf.mxu0
    %v1957 = vadd.f32 %v290, %v1956
    %v1958 = vpop.f32.mrf.mxu0
    %1959 = vmatprep.mubr.f32.mxu0 0.0
    %1960 = vmatmul.mubr.f32.gmra.mxu0 %v792
    %v1961 = vpop.f32.mrf.mxu0
    %v1962 = vadd.f32 %v290, %v1961
    %v1963 = vpop.f32.mrf.mxu0
    %1964 = vmatprep.mubr.f32.mxu0 0.0
    %1965 = vmatmul.mubr.f32.gmra.mxu0 %v795
    %v1966 = vpop.f32.mrf.mxu0
    %v1967 = vadd.f32 %v290, %v1966
    %v1968 = vpop.f32.mrf.mxu0
    %1969 = vmatprep.mubr.f32.mxu0 0.0
    %1970 = vmatmul.mubr.f32.gmra.mxu0 %v798
    %v1971 = vpop.f32.mrf.mxu0
    %v1972 = vadd.f32 %v290, %v1971
    %v1973 = vpop.f32.mrf.mxu0
    %1974 = vmatprep.mubr.f32.mxu0 0.0
    %1975 = vmatmul.mubr.f32.gmra.mxu0 %v801
    %v1976 = vpop.f32.mrf.mxu0
    %v1977 = vadd.f32 %v290, %v1976
    %v1978 = vpop.f32.mrf.mxu0
    %1979 = vmatprep.mubr.f32.mxu0 0.0
    %1980 = vmatmul.mubr.f32.gmra.mxu0 %v804
    %v1981 = vpop.f32.mrf.mxu0
    %v1982 = vadd.f32 %v290, %v1981
    %v1983 = vpop.f32.mrf.mxu0
    %1984 = vmatprep.mubr.f32.mxu0 0.0
    %1985 = vmatmul.mubr.f32.gmra.mxu0 %v807
    %v1986 = vpop.f32.mrf.mxu0
    %v1987 = vadd.f32 %v290, %v1986
    %v1988 = vpop.f32.mrf.mxu0
    %1989 = vmatprep.mubr.f32.mxu0 0.0
    %1990 = vmatmul.mubr.f32.gmra.mxu0 %v810
    %v1991 = vpop.f32.mrf.mxu0
    %v1992 = vadd.f32 %v290, %v1991
    %v1993 = vpop.f32.mrf.mxu0
    %1994 = vmatprep.mubr.f32.mxu0 0.0
    %1995 = vmatmul.mubr.f32.gmra.mxu0 %v813
    %v1996 = vpop.f32.mrf.mxu0
    %v1997 = vadd.f32 %v290, %v1996
    %v1998 = vpop.f32.mrf.mxu0
    %1999 = vmatprep.mubr.f32.mxu0 0.0
    %2000 = vmatmul.mubr.f32.gmra.mxu0 %v816
    %v2001 = vpop.f32.mrf.mxu0
    %v2002 = vadd.f32 %v290, %v2001
    %v2003 = vpop.f32.mrf.mxu0
    %2004 = vmatprep.mubr.f32.mxu0 0.0
    %2005 = vmatmul.mubr.f32.gmra.mxu0 %v819
    %v2006 = vpop.f32.mrf.mxu0
    %v2007 = vadd.f32 %v290, %v2006
    %v2008 = vpop.f32.mrf.mxu0
    %2009 = vmatprep.mubr.f32.mxu0 0.0
    %2010 = vmatmul.mubr.f32.gmra.mxu0 %v822
    %v2011 = vpop.f32.mrf.mxu0
    %v2012 = vadd.f32 %v290, %v2011
    %v2013 = vpop.f32.mrf.mxu0
    %2014 = vmatprep.mubr.f32.mxu0 0.0
    %2015 = vmatmul.mubr.f32.gmra.mxu0 %v825
    %v2016 = vpop.f32.mrf.mxu0
    %v2017 = vadd.f32 %v290, %v2016
    %v2018 = vpop.f32.mrf.mxu0
    %2019 = vmatprep.mubr.f32.mxu0 0.0
    %2020 = vmatmul.mubr.f32.gmra.mxu0 %v828
    %v2021 = vpop.f32.mrf.mxu0
    %v2022 = vadd.f32 %v290, %v2021
    %v2023 = vpop.f32.mrf.mxu0
    %2024 = vmatprep.mubr.f32.mxu0 0.0
    %2025 = vmatmul.mubr.f32.gmra.mxu0 %v831
    %v2026 = vpop.f32.mrf.mxu0
    %v2027 = vadd.f32 %v290, %v2026
    %v2028 = vpop.f32.mrf.mxu0
    %2029 = vmatprep.mubr.f32.mxu0 0.0
    %2030 = vmatmul.mubr.f32.gmra.mxu0 %v834
    %v2031 = vpop.f32.mrf.mxu0
    %v2032 = vadd.f32 %v290, %v2031
    %v2033 = vpop.f32.mrf.mxu0
    %2034 = vmatprep.mubr.f32.mxu0 0.0
    %2035 = vmatmul.mubr.f32.gmra.mxu0 %v837
    %v2036 = vpop.f32.mrf.mxu0
    %v2037 = vadd.f32 %v290, %v2036
    %v2038 = vpop.f32.mrf.mxu0
    %2039 = vmatprep.mubr.f32.mxu0 0.0
    %2040 = vmatmul.mubr.f32.gmra.mxu0 %v840
    %v2041 = vpop.f32.mrf.mxu0
    %v2042 = vadd.f32 %v290, %v2041
    %v2043 = vpop.f32.mrf.mxu0
    %2044 = vmatprep.mubr.f32.mxu0 0.0
    %2045 = vmatmul.mubr.f32.gmra.mxu0 %v843
    %v2046 = vpop.f32.mrf.mxu0
    %v2047 = vadd.f32 %v290, %v2046
    %v2048 = vpop.f32.mrf.mxu0
    %2049 = vmatprep.mubr.f32.mxu0 0.0
    %2050 = vmatmul.mubr.f32.gmra.mxu0 %v846
    %v2051 = vpop.f32.mrf.mxu0
    %v2052 = vadd.f32 %v290, %v2051
    %v2053 = vpop.f32.mrf.mxu0
    %2054 = vmatprep.mubr.f32.mxu0 0.0
    %2055 = vmatmul.mubr.f32.gmra.mxu0 %v849
    %v2056 = vpop.f32.mrf.mxu0
    %v2057 = vadd.f32 %v290, %v2056
    %v2058 = vpop.f32.mrf.mxu0
    %2059 = vmatprep.mubr.f32.mxu0 0.0
    %2060 = vmatmul.mubr.f32.gmra.mxu0 %v852
    %v2061 = vpop.f32.mrf.mxu0
    %v2062 = vadd.f32 %v290, %v2061
    %v2063 = vpop.f32.mrf.mxu0
    %2064 = vmatprep.mubr.f32.mxu0 0.0
    %2065 = vmatmul.mubr.f32.gmra.mxu0 %v855
    %v2066 = vpop.f32.mrf.mxu0
    %v2067 = vadd.f32 %v290, %v2066
    %v2068 = vpop.f32.mrf.mxu0
    %2069 = vmatprep.mubr.f32.mxu0 0.0
    %2070 = vmatmul.mubr.f32.gmra.mxu0 %v858
    %v2071 = vpop.f32.mrf.mxu0
    %v2072 = vadd.f32 %v290, %v2071
    %v2073 = vpop.f32.mrf.mxu0
    %2074 = vmatprep.mubr.f32.mxu0 0.0
    %2075 = vmatmul.mubr.f32.gmra.mxu0 %v861
    %v2076 = vpop.f32.mrf.mxu0
    %v2077 = vadd.f32 %v290, %v2076
    %v2078 = vpop.f32.mrf.mxu0
    %2079 = vmatprep.mubr.f32.mxu0 0.0
    %2080 = vmatmul.mubr.f32.gmra.mxu0 %v864
    %v2081 = vpop.f32.mrf.mxu0
    %v2082 = vadd.f32 %v290, %v2081
    %v2083 = vpop.f32.mrf.mxu0
    %2084 = vmatprep.mubr.f32.mxu0 0.0
    %2085 = vmatmul.mubr.f32.gmra.mxu0 %v867
    %v2086 = vpop.f32.mrf.mxu0
    %v2087 = vadd.f32 %v290, %v2086
    %v2088 = vpop.f32.mrf.mxu0
    %2089 = vmatprep.mubr.f32.mxu0 0.0
    %2090 = vmatmul.mubr.f32.gmra.mxu0 %v870
    %v2091 = vpop.f32.mrf.mxu0
    %v2092 = vadd.f32 %v290, %v2091
    %v2093 = vpop.f32.mrf.mxu0
    %2094 = vmatprep.mubr.f32.mxu0 0.0
    %2095 = vmatmul.mubr.f32.gmra.mxu0 %v873
    %v2096 = vpop.f32.mrf.mxu0
    %v2097 = vadd.f32 %v290, %v2096
    %v2098 = vpop.f32.mrf.mxu0
    %2099 = vmatprep.mubr.f32.mxu0 0.0
    %2100 = vmatmul.mubr.f32.gmra.mxu0 %v876
    %v2101 = vpop.f32.mrf.mxu0
    %v2102 = vadd.f32 %v290, %v2101
    %v2103 = vpop.f32.mrf.mxu0
    %2104 = vmatprep.mubr.f32.mxu0 0.0
    %2105 = vmatmul.mubr.f32.gmra.mxu0 %v879
    %v2106 = vpop.f32.mrf.mxu0
    %v2107 = vadd.f32 %v290, %v2106
    %v2108 = vpop.f32.mrf.mxu0
    %2109 = vmatprep.mubr.f32.mxu0 0.0
    %2110 = vmatmul.mubr.f32.gmra.mxu0 %v882
    %v2111 = vpop.f32.mrf.mxu0
    %v2112 = vadd.f32 %v290, %v2111
    %v2113 = vpop.f32.mrf.mxu0
    %2114 = vmatprep.mubr.f32.mxu0 0.0
    %2115 = vmatmul.mubr.f32.gmra.mxu0 %v885
    %v2116 = vpop.f32.mrf.mxu0
    %v2117 = vadd.f32 %v290, %v2116
    %v2118 = vpop.f32.mrf.mxu0
    %2119 = vmatprep.mubr.f32.mxu0 0.0
    %2120 = vmatmul.mubr.f32.gmra.mxu0 %v888
    %v2121 = vpop.f32.mrf.mxu0
    %v2122 = vadd.f32 %v290, %v2121
    %v2123 = vpop.f32.mrf.mxu0
    %2124 = vmatprep.mubr.f32.mxu0 0.0
    %2125 = vmatmul.mubr.f32.gmra.mxu0 %v891
    %v2126 = vpop.f32.mrf.mxu0
    %v2127 = vadd.f32 %v290, %v2126
    %v2128 = vpop.f32.mrf.mxu0
    %2129 = vmatprep.mubr.f32.mxu0 0.0
    %2130 = vmatmul.mubr.f32.gmra.mxu0 %v894
    %v2131 = vpop.f32.mrf.mxu0
    %v2132 = vadd.f32 %v290, %v2131
    %v2133 = vpop.f32.mrf.mxu0
    %2134 = vmatprep.mubr.f32.mxu0 0.0
    %2135 = vmatmul.mubr.f32.gmra.mxu0 %v897
    %v2136 = vpop.f32.mrf.mxu0
    %v2137 = vadd.f32 %v290, %v2136
    %v2138 = vpop.f32.mrf.mxu0
    %2139 = vmatprep.mubr.f32.mxu0 0.0
    %2140 = vmatmul.mubr.f32.gmra.mxu0 %v900
    %v2141 = vpop.f32.mrf.mxu0
    %v2142 = vadd.f32 %v290, %v2141
    %v2143 = vpop.f32.mrf.mxu0
    %2144 = vmatprep.mubr.f32.mxu0 0.0
    %2145 = vmatmul.mubr.f32.gmra.mxu0 %v903
    %v2146 = vpop.f32.mrf.mxu0
    %v2147 = vadd.f32 %v290, %v2146
    %v2148 = vpop.f32.mrf.mxu0
    %2149 = vmatprep.mubr.f32.mxu0 0.0
    %2150 = vmatmul.mubr.f32.gmra.mxu0 %v906
    %v2151 = vpop.f32.mrf.mxu0
    %v2152 = vadd.f32 %v290, %v2151
    %v2153 = vpop.f32.mrf.mxu0
    %2154 = vmatprep.mubr.f32.mxu0 0.0
    %2155 = vmatmul.mubr.f32.gmra.mxu0 %v909
    %v2156 = vpop.f32.mrf.mxu0
    %v2157 = vadd.f32 %v290, %v2156
    %v2158 = vpop.f32.mrf.mxu0
    %2159 = vmatprep.mubr.f32.mxu0 0.0
    %2160 = vmatmul.mubr.f32.gmra.mxu0 %v912
    %v2161 = vpop.f32.mrf.mxu0
    %v2162 = vadd.f32 %v290, %v2161
    %v2163 = vpop.f32.mrf.mxu0
    %2164 = vmatprep.mubr.f32.mxu0 0.0
    %2165 = vmatmul.mubr.f32.gmra.mxu0 %v915
    %v2166 = vpop.f32.mrf.mxu0
    %v2167 = vadd.f32 %v290, %v2166
    %v2168 = vpop.f32.mrf.mxu0
    %2169 = vmatprep.mubr.f32.mxu0 0.0
    %2170 = vmatmul.mubr.f32.gmra.mxu0 %v918
    %v2171 = vpop.f32.mrf.mxu0
    %v2172 = vadd.f32 %v290, %v2171
    %v2173 = vpop.f32.mrf.mxu0
    %2174 = vmatprep.mubr.f32.mxu0 0.0
    %2175 = vmatmul.mubr.f32.gmra.mxu0 %v921
    %v2176 = vpop.f32.mrf.mxu0
    %v2177 = vadd.f32 %v290, %v2176
    %v2178 = vpop.f32.mrf.mxu0
    %2179 = vmatprep.mubr.f32.mxu0 0.0
    %2180 = vmatmul.mubr.f32.gmra.mxu0 %v924
    %v2181 = vpop.f32.mrf.mxu0
    %v2182 = vadd.f32 %v290, %v2181
    %v2183 = vpop.f32.mrf.mxu0
    %2184 = vmatprep.mubr.f32.mxu0 0.0
    %2185 = vmatmul.mubr.f32.gmra.mxu0 %v927
    %v2186 = vpop.f32.mrf.mxu0
    %v2187 = vadd.f32 %v290, %v2186
    %v2188 = vpop.f32.mrf.mxu0
    %2189 = vmatprep.mubr.f32.mxu0 0.0
    %2190 = vmatmul.mubr.f32.gmra.mxu0 %v930
    %v2191 = vpop.f32.mrf.mxu0
    %v2192 = vadd.f32 %v290, %v2191
    %v2193 = vpop.f32.mrf.mxu0
    %2194 = vmatprep.mubr.f32.mxu0 0.0
    %2195 = vmatmul.mubr.f32.gmra.mxu0 %v933
    %v2196 = vpop.f32.mrf.mxu0
    %v2197 = vadd.f32 %v290, %v2196
    %v2198 = vpop.f32.mrf.mxu0
    %2199 = vmatprep.mubr.f32.mxu0 0.0
    %2200 = vmatmul.mubr.f32.gmra.mxu0 %v936
    %v2201 = vpop.f32.mrf.mxu0
    %v2202 = vadd.f32 %v290, %v2201
    %v2203 = vpop.f32.mrf.mxu0
    %2204 = vmatprep.mubr.f32.mxu0 0.0
    %2205 = vmatmul.mubr.f32.gmra.mxu0 %v939
    %v2206 = vpop.f32.mrf.mxu0
    %v2207 = vadd.f32 %v290, %v2206
    %v2208 = vpop.f32.mrf.mxu0
    %2209 = vmatprep.mubr.f32.mxu0 0.0
    %2210 = vmatmul.mubr.f32.gmra.mxu0 %v942
    %v2211 = vpop.f32.mrf.mxu0
    %v2212 = vadd.f32 %v290, %v2211
    %v2213 = vpop.f32.mrf.mxu0
    %2214 = vmatprep.mubr.f32.mxu0 0.0
    %2215 = vmatmul.mubr.f32.gmra.mxu0 %v945
    %v2216 = vpop.f32.mrf.mxu0
    %v2217 = vadd.f32 %v290, %v2216
    %v2218 = vpop.f32.mrf.mxu0
    %2219 = vmatprep.mubr.f32.mxu0 0.0
    %2220 = vmatmul.mubr.f32.gmra.mxu0 %v948
    %v2221 = vpop.f32.mrf.mxu0
    %v2222 = vadd.f32 %v290, %v2221
    %v2223 = vpop.f32.mrf.mxu0
    %2224 = vmatprep.mubr.f32.mxu0 0.0
    %2225 = vmatmul.mubr.f32.gmra.mxu0 %v951
    %v2226 = vpop.f32.mrf.mxu0
    %v2227 = vadd.f32 %v290, %v2226
    %v2228 = vpop.f32.mrf.mxu0
    %2229 = vmatprep.mubr.f32.mxu0 0.0
    %2230 = vmatmul.mubr.f32.gmra.mxu0 %v954
    %v2231 = vpop.f32.mrf.mxu0
    %v2232 = vadd.f32 %v290, %v2231
    %v2233 = vpop.f32.mrf.mxu0
    %2234 = vmatprep.mubr.f32.mxu0 0.0
    %2235 = vmatmul.mubr.f32.gmra.mxu0 %v957
    %v2236 = vpop.f32.mrf.mxu0
    %v2237 = vadd.f32 %v290, %v2236
    %v2238 = vpop.f32.mrf.mxu0
    %2239 = vmatprep.mubr.f32.mxu0 0.0
    %2240 = vmatmul.mubr.f32.gmra.mxu0 %v960
    %v2241 = vpop.f32.mrf.mxu0
    %v2242 = vadd.f32 %v290, %v2241
    %v2243 = vpop.f32.mrf.mxu0
    %2244 = vmatprep.mubr.f32.mxu0 0.0
    %2245 = vmatmul.mubr.f32.gmra.mxu0 %v963
    %v2246 = vpop.f32.mrf.mxu0
    %v2247 = vadd.f32 %v290, %v2246
    %v2248 = vpop.f32.mrf.mxu0
    %2249 = vmatprep.mubr.f32.mxu0 0.0
    %2250 = vmatmul.mubr.f32.gmra.mxu0 %v966
    %v2251 = vpop.f32.mrf.mxu0
    %v2252 = vadd.f32 %v290, %v2251
    %v2253 = vpop.f32.mrf.mxu0
    %2254 = vmatprep.mubr.f32.mxu0 0.0
    %2255 = vmatmul.mubr.f32.gmra.mxu0 %v969
    %v2256 = vpop.f32.mrf.mxu0
    %v2257 = vadd.f32 %v290, %v2256
    %v2258 = vpop.f32.mrf.mxu0
    %2259 = vmatprep.mubr.f32.mxu0 0.0
    %2260 = vmatmul.mubr.f32.gmra.mxu0 %v972
    %v2261 = vpop.f32.mrf.mxu0
    %v2262 = vadd.f32 %v290, %v2261
    %v2263 = vpop.f32.mrf.mxu0
    %2264 = vmatprep.mubr.f32.mxu0 0.0
    %2265 = vmatmul.mubr.f32.gmra.mxu0 %v975
    %v2266 = vpop.f32.mrf.mxu0
    %v2267 = vadd.f32 %v290, %v2266
    %v2268 = vpop.f32.mrf.mxu0
    %2269 = vmatprep.mubr.f32.mxu0 0.0
    %2270 = vmatmul.mubr.f32.gmra.mxu0 %v978
    %v2271 = vpop.f32.mrf.mxu0
    %v2272 = vadd.f32 %v290, %v2271
    %v2273 = vpop.f32.mrf.mxu0
    %2274 = vmatprep.mubr.f32.mxu0 0.0
    %2275 = vmatmul.mubr.f32.gmra.mxu0 %v981
    %v2276 = vpop.f32.mrf.mxu0
    %v2277 = vadd.f32 %v290, %v2276
    %v2278 = vpop.f32.mrf.mxu0
    %2279 = vmatprep.mubr.f32.mxu0 0.0
    %2280 = vmatmul.mubr.f32.gmra.mxu0 %v984
    %v2281 = vpop.f32.mrf.mxu0
    %v2282 = vadd.f32 %v290, %v2281
    %v2283 = vpop.f32.mrf.mxu0
    %2284 = vmatprep.mubr.f32.mxu0 0.0
    %2285 = vmatmul.mubr.f32.gmra.mxu0 %v987
    %v2286 = vpop.f32.mrf.mxu0
    %v2287 = vadd.f32 %v290, %v2286
    %v2288 = vpop.f32.mrf.mxu0
    %2289 = vmatprep.mubr.f32.mxu0 0.0
    %2290 = vmatmul.mubr.f32.gmra.mxu0 %v990
    %v2291 = vpop.f32.mrf.mxu0
    %v2292 = vadd.f32 %v290, %v2291
    %v2293 = vpop.f32.mrf.mxu0
    %2294 = vmatprep.mubr.f32.mxu0 0.0
    %2295 = vmatmul.mubr.f32.gmra.mxu0 %v993
    %v2296 = vpop.f32.mrf.mxu0
    %v2297 = vadd.f32 %v290, %v2296
    %v2298 = vpop.f32.mrf.mxu0
    %2299 = vmatprep.mubr.f32.mxu0 0.0
    %2300 = vmatmul.mubr.f32.gmra.mxu0 %v996
    %v2301 = vpop.f32.mrf.mxu0
    %v2302 = vadd.f32 %v290, %v2301
    %v2303 = vpop.f32.mrf.mxu0
    %2304 = vmatprep.mubr.f32.mxu0 0.0
    %2305 = vmatmul.mubr.f32.gmra.mxu0 %v999
    %v2306 = vpop.f32.mrf.mxu0
    %v2307 = vadd.f32 %v290, %v2306
    %v2308 = vpop.f32.mrf.mxu0
    %2309 = vmatprep.mubr.f32.mxu0 0.0
    %2310 = vmatmul.mubr.f32.gmra.mxu0 %v1002
    %v2311 = vpop.f32.mrf.mxu0
    %v2312 = vadd.f32 %v290, %v2311
    %v2313 = vpop.f32.mrf.mxu0
    %2314 = vmatprep.mubr.f32.mxu0 0.0
    %2315 = vmatmul.mubr.f32.gmra.mxu0 %v1005
    %v2316 = vpop.f32.mrf.mxu0
    %v2317 = vadd.f32 %v290, %v2316
    %v2318 = vpop.f32.mrf.mxu0
    %2319 = vmatprep.mubr.f32.mxu0 0.0
    %2320 = vmatmul.mubr.f32.gmra.mxu0 %v1008
    %v2321 = vpop.f32.mrf.mxu0
    %v2322 = vadd.f32 %v290, %v2321
    %v2323 = vpop.f32.mrf.mxu0
    %2324 = vmatprep.mubr.f32.mxu0 0.0
    %2325 = vmatmul.mubr.f32.gmra.mxu0 %v1011
    %v2326 = vpop.f32.mrf.mxu0
    %v2327 = vadd.f32 %v290, %v2326
    %v2328 = vpop.f32.mrf.mxu0
    %2329 = vmatprep.mubr.f32.mxu0 0.0
    %2330 = vmatmul.mubr.f32.gmra.mxu0 %v1014
    %v2331 = vpop.f32.mrf.mxu0
    %v2332 = vadd.f32 %v290, %v2331
    %v2333 = vpop.f32.mrf.mxu0
    %2334 = vmatprep.mubr.f32.mxu0 0.0
    %2335 = vmatmul.mubr.f32.gmra.mxu0 %v1017
    %v2336 = vpop.f32.mrf.mxu0
    %v2337 = vadd.f32 %v290, %v2336
    %v2338 = vpop.f32.mrf.mxu0
    %2339 = vmatprep.mubr.f32.mxu0 0.0
    %2340 = vmatmul.mubr.f32.gmra.mxu0 %v1020
    %v2341 = vpop.f32.mrf.mxu0
    %v2342 = vadd.f32 %v290, %v2341
    %v2343 = vpop.f32.mrf.mxu0
    %2344 = vmatprep.mubr.f32.mxu0 0.0
    %2345 = vmatmul.mubr.f32.gmra.mxu0 %v1023
    %v2346 = vpop.f32.mrf.mxu0
    %v2347 = vadd.f32 %v290, %v2346
    %v2348 = vpop.f32.mrf.mxu0
    %2349 = vmatprep.mubr.f32.mxu0 0.0
    %2350 = vmatmul.mubr.f32.gmra.mxu0 %v1026
    %v2351 = vpop.f32.mrf.mxu0
    %v2352 = vadd.f32 %v290, %v2351
    %v2353 = vpop.f32.mrf.mxu0
    %2354 = vmatprep.mubr.f32.mxu0 0.0
    %2355 = vmatmul.mubr.f32.gmra.mxu0 %v1029
    %v2356 = vpop.f32.mrf.mxu0
    %v2357 = vadd.f32 %v290, %v2356
    %v2358 = vpop.f32.mrf.mxu0
    %2359 = vmatprep.mubr.f32.mxu0 0.0
    %2360 = vmatmul.mubr.f32.gmra.mxu0 %v1032
    %v2361 = vpop.f32.mrf.mxu0
    %v2362 = vadd.f32 %v290, %v2361
    %v2363 = vpop.f32.mrf.mxu0
    %2364 = vmatprep.mubr.f32.mxu0 0.0
    %2365 = vmatmul.mubr.f32.gmra.mxu0 %v1035
    %v2366 = vpop.f32.mrf.mxu0
    %v2367 = vadd.f32 %v290, %v2366
    %v2368 = vpop.f32.mrf.mxu0
    %2369 = vmatprep.mubr.f32.mxu0 0.0
    %2370 = vmatmul.mubr.f32.gmra.mxu0 %v1038
    %v2371 = vpop.f32.mrf.mxu0
    %v2372 = vadd.f32 %v290, %v2371
    %v2373 = vpop.f32.mrf.mxu0
    %2374 = vmatprep.mubr.f32.mxu0 0.0
    %2375 = vmatmul.mubr.f32.gmra.mxu0 %v1041
    %v2376 = vpop.f32.mrf.mxu0
    %v2377 = vadd.f32 %v290, %v2376
    %v2378 = vpop.f32.mrf.mxu0
    %2379 = vmatprep.mubr.f32.mxu0 0.0
    %2380 = vmatmul.mubr.f32.gmra.mxu0 %v1044
    %v2381 = vpop.f32.mrf.mxu0
    %v2382 = vadd.f32 %v290, %v2381
    %v2383 = vpop.f32.mrf.mxu0
    %2384 = vmatprep.mubr.f32.mxu0 0.0
    %2385 = vmatmul.mubr.f32.gmra.mxu0 %v1047
    %v2386 = vpop.f32.mrf.mxu0
    %v2387 = vadd.f32 %v290, %v2386
    %v2388 = vpop.f32.mrf.mxu0
    %2389 = vmatprep.mubr.f32.mxu0 0.0
    %2390 = vmatmul.mubr.f32.gmra.mxu0 %v1050
    %v2391 = vpop.f32.mrf.mxu0
    %v2392 = vadd.f32 %v290, %v2391
    %v2393 = vpop.f32.mrf.mxu0
    %2394 = vmatprep.mubr.f32.mxu0 0.0
    %2395 = vmatmul.mubr.f32.gmra.mxu0 %v1053
    %v2396 = vpop.f32.mrf.mxu0
    %v2397 = vadd.f32 %v290, %v2396
    %v2398 = vpop.f32.mrf.mxu0
    %2399 = vmatprep.mubr.f32.mxu0 0.0
    %2400 = vmatmul.mubr.f32.gmra.mxu0 %v1056
    %v2401 = vpop.f32.mrf.mxu0
    %v2402 = vadd.f32 %v290, %v2401
    %v2403 = vpop.f32.mrf.mxu0
    %2404 = vmatprep.mubr.f32.mxu0 0.0
    %2405 = vmatmul.mubr.f32.gmra.mxu0 %v1059
    %v2406 = vpop.f32.mrf.mxu0
    %v2407 = vadd.f32 %v290, %v2406
    %v2408 = vpop.f32.mrf.mxu0
    %2409 = vdwg.mxu0
    %v2410 = vmax.f32 %v1132, 0.0
    %v2411 = vmax.f32 %v1137, 0.0
    %v2412 = vmax.f32 %v1142, 0.0
    %v2413 = vmax.f32 %v1147, 0.0
    %v2414 = vmax.f32 %v1152, 0.0
    %v2415 = vmax.f32 %v1157, 0.0
    %v2416 = vmax.f32 %v1162, 0.0
    %v2417 = vmax.f32 %v1167, 0.0
    %v2418 = vmax.f32 %v1172, 0.0
    %v2419 = vmax.f32 %v1177, 0.0
    %v2420 = vmax.f32 %v1182, 0.0
    %v2421 = vmax.f32 %v1187, 0.0
    %v2422 = vmax.f32 %v1192, 0.0
    %v2423 = vmax.f32 %v1197, 0.0
    %v2424 = vmax.f32 %v1202, 0.0
    %v2425 = vmax.f32 %v1207, 0.0
    %v2426 = vmax.f32 %v1212, 0.0
    %v2427 = vmax.f32 %v1217, 0.0
    %v2428 = vmax.f32 %v1222, 0.0
    %v2429 = vmax.f32 %v1227, 0.0
    %v2430 = vmax.f32 %v1232, 0.0
    %v2431 = vmax.f32 %v1237, 0.0
    %v2432 = vmax.f32 %v1242, 0.0
    %v2433 = vmax.f32 %v1247, 0.0
    %v2434 = vmax.f32 %v1252, 0.0
    %v2435 = vmax.f32 %v1257, 0.0
    %v2436 = vmax.f32 %v1262, 0.0
    %v2437 = vmax.f32 %v1267, 0.0
    %v2438 = vmax.f32 %v1272, 0.0
    %v2439 = vmax.f32 %v1277, 0.0
    %v2440 = vmax.f32 %v1282, 0.0
    %v2441 = vmax.f32 %v1287, 0.0
    %v2442 = vmax.f32 %v1292, 0.0
    %v2443 = vmax.f32 %v1297, 0.0
    %v2444 = vmax.f32 %v1302, 0.0
    %v2445 = vmax.f32 %v1307, 0.0
    %v2446 = vmax.f32 %v1312, 0.0
    %v2447 = vmax.f32 %v1317, 0.0
    %v2448 = vmax.f32 %v1322, 0.0
    %v2449 = vmax.f32 %v1327, 0.0
    %v2450 = vmax.f32 %v1332, 0.0
    %v2451 = vmax.f32 %v1337, 0.0
    %v2452 = vmax.f32 %v1342, 0.0
    %v2453 = vmax.f32 %v1347, 0.0
    %v2454 = vmax.f32 %v1352, 0.0
    %v2455 = vmax.f32 %v1357, 0.0
    %v2456 = vmax.f32 %v1362, 0.0
    %v2457 = vmax.f32 %v1367, 0.0
    %v2458 = vmax.f32 %v1372, 0.0
    %v2459 = vmax.f32 %v1377, 0.0
    %v2460 = vmax.f32 %v1382, 0.0
    %v2461 = vmax.f32 %v1387, 0.0
    %v2462 = vmax.f32 %v1392, 0.0
    %v2463 = vmax.f32 %v1397, 0.0
    %v2464 = vmax.f32 %v1402, 0.0
    %v2465 = vmax.f32 %v1407, 0.0
    %v2466 = vmax.f32 %v1412, 0.0
    %v2467 = vmax.f32 %v1417, 0.0
    %v2468 = vmax.f32 %v1422, 0.0
    %v2469 = vmax.f32 %v1427, 0.0
    %v2470 = vmax.f32 %v1432, 0.0
    %v2471 = vmax.f32 %v1437, 0.0
    %v2472 = vmax.f32 %v1442, 0.0
    %v2473 = vmax.f32 %v1447, 0.0
    %v2474 = vmax.f32 %v1452, 0.0
    %v2475 = vmax.f32 %v1457, 0.0
    %v2476 = vmax.f32 %v1462, 0.0
    %v2477 = vmax.f32 %v1467, 0.0
    %v2478 = vmax.f32 %v1472, 0.0
    %v2479 = vmax.f32 %v1477, 0.0
    %v2480 = vmax.f32 %v1482, 0.0
    %v2481 = vmax.f32 %v1487, 0.0
    %v2482 = vmax.f32 %v1492, 0.0
    %v2483 = vmax.f32 %v1497, 0.0
    %v2484 = vmax.f32 %v1502, 0.0
    %v2485 = vmax.f32 %v1507, 0.0
    %v2486 = vmax.f32 %v1512, 0.0
    %v2487 = vmax.f32 %v1517, 0.0
    %v2488 = vmax.f32 %v1522, 0.0
    %v2489 = vmax.f32 %v1527, 0.0
    %v2490 = vmax.f32 %v1532, 0.0
    %v2491 = vmax.f32 %v1537, 0.0
    %v2492 = vmax.f32 %v1542, 0.0
    %v2493 = vmax.f32 %v1547, 0.0
    %v2494 = vmax.f32 %v1552, 0.0
    %v2495 = vmax.f32 %v1557, 0.0
    %v2496 = vmax.f32 %v1562, 0.0
    %v2497 = vmax.f32 %v1567, 0.0
    %v2498 = vmax.f32 %v1572, 0.0
    %v2499 = vmax.f32 %v1577, 0.0
    %v2500 = vmax.f32 %v1582, 0.0
    %v2501 = vmax.f32 %v1587, 0.0
    %v2502 = vmax.f32 %v1592, 0.0
    %v2503 = vmax.f32 %v1597, 0.0
    %v2504 = vmax.f32 %v1602, 0.0
    %v2505 = vmax.f32 %v1607, 0.0
    %v2506 = vmax.f32 %v1612, 0.0
    %v2507 = vmax.f32 %v1617, 0.0
    %v2508 = vmax.f32 %v1622, 0.0
    %v2509 = vmax.f32 %v1627, 0.0
    %v2510 = vmax.f32 %v1632, 0.0
    %v2511 = vmax.f32 %v1637, 0.0
    %v2512 = vmax.f32 %v1642, 0.0
    %v2513 = vmax.f32 %v1647, 0.0
    %v2514 = vmax.f32 %v1652, 0.0
    %v2515 = vmax.f32 %v1657, 0.0
    %v2516 = vmax.f32 %v1662, 0.0
    %v2517 = vmax.f32 %v1667, 0.0
    %v2518 = vmax.f32 %v1672, 0.0
    %v2519 = vmax.f32 %v1677, 0.0
    %v2520 = vmax.f32 %v1682, 0.0
    %v2521 = vmax.f32 %v1687, 0.0
    %v2522 = vmax.f32 %v1692, 0.0
    %v2523 = vmax.f32 %v1697, 0.0
    %v2524 = vmax.f32 %v1702, 0.0
    %v2525 = vmax.f32 %v1707, 0.0
    %v2526 = vmax.f32 %v1712, 0.0
    %v2527 = vmax.f32 %v1717, 0.0
    %v2528 = vmax.f32 %v1722, 0.0
    %v2529 = vmax.f32 %v1727, 0.0
    %v2530 = vmax.f32 %v1732, 0.0
    %v2531 = vmax.f32 %v1737, 0.0
    %v2532 = vmax.f32 %v1742, 0.0
    %v2533 = vmax.f32 %v1747, 0.0
    %v2534 = vmax.f32 %v1752, 0.0
    %v2535 = vmax.f32 %v1757, 0.0
    %v2536 = vmax.f32 %v1762, 0.0
    %v2537 = vmax.f32 %v1767, 0.0
    %v2538 = vmax.f32 %v1772, 0.0
    %v2539 = vmax.f32 %v1777, 0.0
    %v2540 = vmax.f32 %v1782, 0.0
    %v2541 = vmax.f32 %v1787, 0.0
    %v2542 = vmax.f32 %v1792, 0.0
    %v2543 = vmax.f32 %v1797, 0.0
    %v2544 = vmax.f32 %v1802, 0.0
    %v2545 = vmax.f32 %v1807, 0.0
    %v2546 = vmax.f32 %v1812, 0.0
    %v2547 = vmax.f32 %v1817, 0.0
    %v2548 = vmax.f32 %v1822, 0.0
    %v2549 = vmax.f32 %v1827, 0.0
    %v2550 = vmax.f32 %v1832, 0.0
    %v2551 = vmax.f32 %v1837, 0.0
    %v2552 = vmax.f32 %v1842, 0.0
    %v2553 = vmax.f32 %v1847, 0.0
    %v2554 = vmax.f32 %v1852, 0.0
    %v2555 = vmax.f32 %v1857, 0.0
    %v2556 = vmax.f32 %v1862, 0.0
    %v2557 = vmax.f32 %v1867, 0.0
    %v2558 = vmax.f32 %v1872, 0.0
    %v2559 = vmax.f32 %v1877, 0.0
    %v2560 = vmax.f32 %v1882, 0.0
    %v2561 = vmax.f32 %v1887, 0.0
    %v2562 = vmax.f32 %v1892, 0.0
    %v2563 = vmax.f32 %v1897, 0.0
    %v2564 = vmax.f32 %v1902, 0.0
    %v2565 = vmax.f32 %v1907, 0.0
    %v2566 = vmax.f32 %v1912, 0.0
    %v2567 = vmax.f32 %v1917, 0.0
    %v2568 = vmax.f32 %v1922, 0.0
    %v2569 = vmax.f32 %v1927, 0.0
    %v2570 = vmax.f32 %v1932, 0.0
    %v2571 = vmax.f32 %v1937, 0.0
    %v2572 = vmax.f32 %v1942, 0.0
    %v2573 = vmax.f32 %v1947, 0.0
    %v2574 = vmax.f32 %v1952, 0.0
    %v2575 = vmax.f32 %v1957, 0.0
    %v2576 = vmax.f32 %v1962, 0.0
    %v2577 = vmax.f32 %v1967, 0.0
    %v2578 = vmax.f32 %v1972, 0.0
    %v2579 = vmax.f32 %v1977, 0.0
    %v2580 = vmax.f32 %v1982, 0.0
    %v2581 = vmax.f32 %v1987, 0.0
    %v2582 = vmax.f32 %v1992, 0.0
    %v2583 = vmax.f32 %v1997, 0.0
    %v2584 = vmax.f32 %v2002, 0.0
    %v2585 = vmax.f32 %v2007, 0.0
    %v2586 = vmax.f32 %v2012, 0.0
    %v2587 = vmax.f32 %v2017, 0.0
    %v2588 = vmax.f32 %v2022, 0.0
    %v2589 = vmax.f32 %v2027, 0.0
    %v2590 = vmax.f32 %v2032, 0.0
    %v2591 = vmax.f32 %v2037, 0.0
    %v2592 = vmax.f32 %v2042, 0.0
    %v2593 = vmax.f32 %v2047, 0.0
    %v2594 = vmax.f32 %v2052, 0.0
    %v2595 = vmax.f32 %v2057, 0.0
    %v2596 = vmax.f32 %v2062, 0.0
    %v2597 = vmax.f32 %v2067, 0.0
    %v2598 = vmax.f32 %v2072, 0.0
    %v2599 = vmax.f32 %v2077, 0.0
    %v2600 = vmax.f32 %v2082, 0.0
    %v2601 = vmax.f32 %v2087, 0.0
    %v2602 = vmax.f32 %v2092, 0.0
    %v2603 = vmax.f32 %v2097, 0.0
    %v2604 = vmax.f32 %v2102, 0.0
    %v2605 = vmax.f32 %v2107, 0.0
    %v2606 = vmax.f32 %v2112, 0.0
    %v2607 = vmax.f32 %v2117, 0.0
    %v2608 = vmax.f32 %v2122, 0.0
    %v2609 = vmax.f32 %v2127, 0.0
    %v2610 = vmax.f32 %v2132, 0.0
    %v2611 = vmax.f32 %v2137, 0.0
    %v2612 = vmax.f32 %v2142, 0.0
    %v2613 = vmax.f32 %v2147, 0.0
    %v2614 = vmax.f32 %v2152, 0.0
    %v2615 = vmax.f32 %v2157, 0.0
    %v2616 = vmax.f32 %v2162, 0.0
    %v2617 = vmax.f32 %v2167, 0.0
    %v2618 = vmax.f32 %v2172, 0.0
    %v2619 = vmax.f32 %v2177, 0.0
    %v2620 = vmax.f32 %v2182, 0.0
    %v2621 = vmax.f32 %v2187, 0.0
    %v2622 = vmax.f32 %v2192, 0.0
    %v2623 = vmax.f32 %v2197, 0.0
    %v2624 = vmax.f32 %v2202, 0.0
    %v2625 = vmax.f32 %v2207, 0.0
    %v2626 = vmax.f32 %v2212, 0.0
    %v2627 = vmax.f32 %v2217, 0.0
    %v2628 = vmax.f32 %v2222, 0.0
    %v2629 = vmax.f32 %v2227, 0.0
    %v2630 = vmax.f32 %v2232, 0.0
    %v2631 = vmax.f32 %v2237, 0.0
    %v2632 = vmax.f32 %v2242, 0.0
    %v2633 = vmax.f32 %v2247, 0.0
    %v2634 = vmax.f32 %v2252, 0.0
    %v2635 = vmax.f32 %v2257, 0.0
    %v2636 = vmax.f32 %v2262, 0.0
    %v2637 = vmax.f32 %v2267, 0.0
    %v2638 = vmax.f32 %v2272, 0.0
    %v2639 = vmax.f32 %v2277, 0.0
    %v2640 = vmax.f32 %v2282, 0.0
    %v2641 = vmax.f32 %v2287, 0.0
    %v2642 = vmax.f32 %v2292, 0.0
    %v2643 = vmax.f32 %v2297, 0.0
    %v2644 = vmax.f32 %v2302, 0.0
    %v2645 = vmax.f32 %v2307, 0.0
    %v2646 = vmax.f32 %v2312, 0.0
    %v2647 = vmax.f32 %v2317, 0.0
    %v2648 = vmax.f32 %v2322, 0.0
    %v2649 = vmax.f32 %v2327, 0.0
    %v2650 = vmax.f32 %v2332, 0.0
    %v2651 = vmax.f32 %v2337, 0.0
    %v2652 = vmax.f32 %v2342, 0.0
    %v2653 = vmax.f32 %v2347, 0.0
    %v2654 = vmax.f32 %v2352, 0.0
    %v2655 = vmax.f32 %v2357, 0.0
    %v2656 = vmax.f32 %v2362, 0.0
    %v2657 = vmax.f32 %v2367, 0.0
    %v2658 = vmax.f32 %v2372, 0.0
    %v2659 = vmax.f32 %v2377, 0.0
    %v2660 = vmax.f32 %v2382, 0.0
    %v2661 = vmax.f32 %v2387, 0.0
    %v2662 = vmax.f32 %v2392, 0.0
    %v2663 = vmax.f32 %v2397, 0.0
    %v2664 = vmax.f32 %v2402, 0.0
    %v2665 = vmax.f32 %v2407, 0.0
    %v2666 = vld [vmem:[%s3] sm:$0xff]
    %v2667 = vld [vmem:[%s3 + $0x8] sm:$0xff]
    %v2668 = vld [vmem:[%s3 + $0x10] sm:$0xff]
    %v2669 = vld [vmem:[%s3 + $0x18] sm:$0xff]
    %v2670 = vld [vmem:[%s3 + $0x20] sm:$0xff]
    %v2671 = vld [vmem:[%s3 + $0x28] sm:$0xff]
    %v2672 = vld [vmem:[%s3 + $0x30] sm:$0xff]
    %v2673 = vld [vmem:[%s3 + $0x38] sm:$0xff]
    %v2674 = vld [vmem:[%s3 + $0x40] sm:$0xff]
    %v2675 = vld [vmem:[%s3 + $0x48] sm:$0xff]
    %v2676 = vld [vmem:[%s3 + $0x50] sm:$0xff]
    %v2677 = vld [vmem:[%s3 + $0x58] sm:$0xff]
    %v2678 = vld [vmem:[%s3 + $0x60] sm:$0xff]
    %v2679 = vld [vmem:[%s3 + $0x68] sm:$0xff]
    %v2680 = vld [vmem:[%s3 + $0x70] sm:$0xff]
    %v2681 = vld [vmem:[%s3 + $0x78] sm:$0xff]
    %2682 = vmatprep.subr.mxu0 0.0
    %2683 = vmatpush1.msra.mxu0 %v2425
    %2684 = vmatprep.subr.mxu0 0.0
    %2685 = vmatpush1.msra.mxu0 %v2424
    %2686 = vmatprep.subr.mxu0 0.0
    %2687 = vmatpush1.msra.mxu0 %v2423
    %2688 = vmatprep.subr.mxu0 0.0
    %2689 = vmatpush1.msra.mxu0 %v2422
    %2690 = vmatprep.subr.mxu0 0.0
    %2691 = vmatpush1.msra.mxu0 %v2421
    %2692 = vmatprep.subr.mxu0 0.0
    %2693 = vmatpush1.msra.mxu0 %v2420
    %2694 = vmatprep.subr.mxu0 0.0
    %2695 = vmatpush1.msra.mxu0 %v2419
    %2696 = vmatprep.subr.mxu0 0.0
    %2697 = vmatpush1.msra.mxu0 %v2418
    %2698 = vmatprep.subr.mxu0 0.0
    %2699 = vmatpush1.msra.mxu0 %v2417
    %2700 = vmatprep.subr.mxu0 0.0
    %2701 = vmatpush1.msra.mxu0 %v2416
    %2702 = vmatprep.subr.mxu0 0.0
    %2703 = vmatpush1.msra.mxu0 %v2415
    %2704 = vmatprep.subr.mxu0 0.0
    %2705 = vmatpush1.msra.mxu0 %v2414
    %2706 = vmatprep.subr.mxu0 0.0
    %2707 = vmatpush1.msra.mxu0 %v2413
    %2708 = vmatprep.subr.mxu0 0.0
    %2709 = vmatpush1.msra.mxu0 %v2412
    %2710 = vmatprep.subr.mxu0 0.0
    %2711 = vmatpush1.msra.mxu0 %v2411
    %2712 = vmatprep.subr.mxu0 0.0
    %2713 = vmatpush1.msra.mxu0 %v2410
    %2714 = vmatprep.subr.mxu0 0.0
    %2715 = vmatpush2.msra.mxu0 %v2441
    %2716 = vmatprep.subr.mxu0 0.0
    %2717 = vmatpush2.msra.mxu0 %v2440
    %2718 = vmatprep.subr.mxu0 0.0
    %2719 = vmatpush2.msra.mxu0 %v2439
    %2720 = vmatprep.subr.mxu0 0.0
    %2721 = vmatpush2.msra.mxu0 %v2438
    %2722 = vmatprep.subr.mxu0 0.0
    %2723 = vmatpush2.msra.mxu0 %v2437
    %2724 = vmatprep.subr.mxu0 0.0
    %2725 = vmatpush2.msra.mxu0 %v2436
    %2726 = vmatprep.subr.mxu0 0.0
    %2727 = vmatpush2.msra.mxu0 %v2435
    %2728 = vmatprep.subr.mxu0 0.0
    %2729 = vmatpush2.msra.mxu0 %v2434
    %2730 = vmatprep.subr.mxu0 0.0
    %2731 = vmatpush2.msra.mxu0 %v2433
    %2732 = vmatprep.subr.mxu0 0.0
    %2733 = vmatpush2.msra.mxu0 %v2432
    %2734 = vmatprep.subr.mxu0 0.0
    %2735 = vmatpush2.msra.mxu0 %v2431
    %2736 = vmatprep.subr.mxu0 0.0
    %2737 = vmatpush2.msra.mxu0 %v2430
    %2738 = vmatprep.subr.mxu0 0.0
    %2739 = vmatpush2.msra.mxu0 %v2429
    %2740 = vmatprep.subr.mxu0 0.0
    %2741 = vmatpush2.msra.mxu0 %v2428
    %2742 = vmatprep.subr.mxu0 0.0
    %2743 = vmatpush2.msra.mxu0 %v2427
    %2744 = vmatprep.subr.mxu0 0.0
    %2745 = vmatpush2.msra.mxu0 %v2426
    %2746 = vmatprep.mubr.f32.mxu0 %v2667
    %2747 = vmatmul.mubr.f32.gmra.mxu0 %v2666
    %v2748 = vpop.f32.mrf.mxu0
    %v2749 = vadd.f32 0.0, %v2748
    %v2750 = vpop.f32.mrf.mxu0
    %2751 = vdwg.mxu0
    %2752 = vmatprep.subr.mxu0 0.0
    %2753 = vmatpush1.msra.mxu0 %v2457
    %2754 = vmatprep.subr.mxu0 0.0
    %2755 = vmatpush1.msra.mxu0 %v2456
    %2756 = vmatprep.subr.mxu0 0.0
    %2757 = vmatpush1.msra.mxu0 %v2455
    %2758 = vmatprep.subr.mxu0 0.0
    %2759 = vmatpush1.msra.mxu0 %v2454
    %2760 = vmatprep.subr.mxu0 0.0
    %2761 = vmatpush1.msra.mxu0 %v2453
    %2762 = vmatprep.subr.mxu0 0.0
    %2763 = vmatpush1.msra.mxu0 %v2452
    %2764 = vmatprep.subr.mxu0 0.0
    %2765 = vmatpush1.msra.mxu0 %v2451
    %2766 = vmatprep.subr.mxu0 0.0
    %2767 = vmatpush1.msra.mxu0 %v2450
    %2768 = vmatprep.subr.mxu0 0.0
    %2769 = vmatpush1.msra.mxu0 %v2449
    %2770 = vmatprep.subr.mxu0 0.0
    %2771 = vmatpush1.msra.mxu0 %v2448
    %2772 = vmatprep.subr.mxu0 0.0
    %2773 = vmatpush1.msra.mxu0 %v2447
    %2774 = vmatprep.subr.mxu0 0.0
    %2775 = vmatpush1.msra.mxu0 %v2446
    %2776 = vmatprep.subr.mxu0 0.0
    %2777 = vmatpush1.msra.mxu0 %v2445
    %2778 = vmatprep.subr.mxu0 0.0
    %2779 = vmatpush1.msra.mxu0 %v2444
    %2780 = vmatprep.subr.mxu0 0.0
    %2781 = vmatpush1.msra.mxu0 %v2443
    %2782 = vmatprep.subr.mxu0 0.0
    %2783 = vmatpush1.msra.mxu0 %v2442
    %2784 = vmatprep.subr.mxu0 0.0
    %2785 = vmatpush2.msra.mxu0 %v2473
    %2786 = vmatprep.subr.mxu0 0.0
    %2787 = vmatpush2.msra.mxu0 %v2472
    %2788 = vmatprep.subr.mxu0 0.0
    %2789 = vmatpush2.msra.mxu0 %v2471
    %2790 = vmatprep.subr.mxu0 0.0
    %2791 = vmatpush2.msra.mxu0 %v2470
    %2792 = vmatprep.subr.mxu0 0.0
    %2793 = vmatpush2.msra.mxu0 %v2469
    %2794 = vmatprep.subr.mxu0 0.0
    %2795 = vmatpush2.msra.mxu0 %v2468
    %2796 = vmatprep.subr.mxu0 0.0
    %2797 = vmatpush2.msra.mxu0 %v2467
    %2798 = vmatprep.subr.mxu0 0.0
    %2799 = vmatpush2.msra.mxu0 %v2466
    %2800 = vmatprep.subr.mxu0 0.0
    %2801 = vmatpush2.msra.mxu0 %v2465
    %2802 = vmatprep.subr.mxu0 0.0
    %2803 = vmatpush2.msra.mxu0 %v2464
    %2804 = vmatprep.subr.mxu0 0.0
    %2805 = vmatpush2.msra.mxu0 %v2463
    %2806 = vmatprep.subr.mxu0 0.0
    %2807 = vmatpush2.msra.mxu0 %v2462
    %2808 = vmatprep.subr.mxu0 0.0
    %2809 = vmatpush2.msra.mxu0 %v2461
    %2810 = vmatprep.subr.mxu0 0.0
    %2811 = vmatpush2.msra.mxu0 %v2460
    %2812 = vmatprep.subr.mxu0 0.0
    %2813 = vmatpush2.msra.mxu0 %v2459
    %2814 = vmatprep.subr.mxu0 0.0
    %2815 = vmatpush2.msra.mxu0 %v2458
    %2816 = vmatprep.mubr.f32.mxu0 %v2669
    %2817 = vmatmul.mubr.f32.gmra.mxu0 %v2668
    %v2818 = vpop.f32.mrf.mxu0
    %v2819 = vadd.f32 %v2749, %v2818
    %v2820 = vpop.f32.mrf.mxu0
    %2821 = vdwg.mxu0
    %2822 = vmatprep.subr.mxu0 0.0
    %2823 = vmatpush1.msra.mxu0 %v2489
    %2824 = vmatprep.subr.mxu0 0.0
    %2825 = vmatpush1.msra.mxu0 %v2488
    %2826 = vmatprep.subr.mxu0 0.0
    %2827 = vmatpush1.msra.mxu0 %v2487
    %2828 = vmatprep.subr.mxu0 0.0
    %2829 = vmatpush1.msra.mxu0 %v2486
    %2830 = vmatprep.subr.mxu0 0.0
    %2831 = vmatpush1.msra.mxu0 %v2485
    %2832 = vmatprep.subr.mxu0 0.0
    %2833 = vmatpush1.msra.mxu0 %v2484
    %2834 = vmatprep.subr.mxu0 0.0
    %2835 = vmatpush1.msra.mxu0 %v2483
    %2836 = vmatprep.subr.mxu0 0.0
    %2837 = vmatpush1.msra.mxu0 %v2482
    %2838 = vmatprep.subr.mxu0 0.0
    %2839 = vmatpush1.msra.mxu0 %v2481
    %2840 = vmatprep.subr.mxu0 0.0
    %2841 = vmatpush1.msra.mxu0 %v2480
    %2842 = vmatprep.subr.mxu0 0.0
    %2843 = vmatpush1.msra.mxu0 %v2479
    %2844 = vmatprep.subr.mxu0 0.0
    %2845 = vmatpush1.msra.mxu0 %v2478
    %2846 = vmatprep.subr.mxu0 0.0
    %2847 = vmatpush1.msra.mxu0 %v2477
    %2848 = vmatprep.subr.mxu0 0.0
    %2849 = vmatpush1.msra.mxu0 %v2476
    %2850 = vmatprep.subr.mxu0 0.0
    %2851 = vmatpush1.msra.mxu0 %v2475
    %2852 = vmatprep.subr.mxu0 0.0
    %2853 = vmatpush1.msra.mxu0 %v2474
    %2854 = vmatprep.subr.mxu0 0.0
    %2855 = vmatpush2.msra.mxu0 %v2505
    %2856 = vmatprep.subr.mxu0 0.0
    %2857 = vmatpush2.msra.mxu0 %v2504
    %2858 = vmatprep.subr.mxu0 0.0
    %2859 = vmatpush2.msra.mxu0 %v2503
    %2860 = vmatprep.subr.mxu0 0.0
    %2861 = vmatpush2.msra.mxu0 %v2502
    %2862 = vmatprep.subr.mxu0 0.0
    %2863 = vmatpush2.msra.mxu0 %v2501
    %2864 = vmatprep.subr.mxu0 0.0
    %2865 = vmatpush2.msra.mxu0 %v2500
    %2866 = vmatprep.subr.mxu0 0.0
    %2867 = vmatpush2.msra.mxu0 %v2499
    %2868 = vmatprep.subr.mxu0 0.0
    %2869 = vmatpush2.msra.mxu0 %v2498
    %2870 = vmatprep.subr.mxu0 0.0
    %2871 = vmatpush2.msra.mxu0 %v2497
    %2872 = vmatprep.subr.mxu0 0.0
    %2873 = vmatpush2.msra.mxu0 %v2496
    %2874 = vmatprep.subr.mxu0 0.0
    %2875 = vmatpush2.msra.mxu0 %v2495
    %2876 = vmatprep.subr.mxu0 0.0
    %2877 = vmatpush2.msra.mxu0 %v2494
    %2878 = vmatprep.subr.mxu0 0.0
    %2879 = vmatpush2.msra.mxu0 %v2493
    %2880 = vmatprep.subr.mxu0 0.0
    %2881 = vmatpush2.msra.mxu0 %v2492
    %2882 = vmatprep.subr.mxu0 0.0
    %2883 = vmatpush2.msra.mxu0 %v2491
    %2884 = vmatprep.subr.mxu0 0.0
    %2885 = vmatpush2.msra.mxu0 %v2490
    %2886 = vmatprep.mubr.f32.mxu0 %v2671
    %2887 = vmatmul.mubr.f32.gmra.mxu0 %v2670
    %v2888 = vpop.f32.mrf.mxu0
    %v2889 = vadd.f32 %v2819, %v2888
    %v2890 = vpop.f32.mrf.mxu0
    %2891 = vdwg.mxu0
    %2892 = vmatprep.subr.mxu0 0.0
    %2893 = vmatpush1.msra.mxu0 %v2521
    %2894 = vmatprep.subr.mxu0 0.0
    %2895 = vmatpush1.msra.mxu0 %v2520
    %2896 = vmatprep.subr.mxu0 0.0
    %2897 = vmatpush1.msra.mxu0 %v2519
    %2898 = vmatprep.subr.mxu0 0.0
    %2899 = vmatpush1.msra.mxu0 %v2518
    %2900 = vmatprep.subr.mxu0 0.0
    %2901 = vmatpush1.msra.mxu0 %v2517
    %2902 = vmatprep.subr.mxu0 0.0
    %2903 = vmatpush1.msra.mxu0 %v2516
    %2904 = vmatprep.subr.mxu0 0.0
    %2905 = vmatpush1.msra.mxu0 %v2515
    %2906 = vmatprep.subr.mxu0 0.0
    %2907 = vmatpush1.msra.mxu0 %v2514
    %2908 = vmatprep.subr.mxu0 0.0
    %2909 = vmatpush1.msra.mxu0 %v2513
    %2910 = vmatprep.subr.mxu0 0.0
    %2911 = vmatpush1.msra.mxu0 %v2512
    %2912 = vmatprep.subr.mxu0 0.0
    %2913 = vmatpush1.msra.mxu0 %v2511
    %2914 = vmatprep.subr.mxu0 0.0
    %2915 = vmatpush1.msra.mxu0 %v2510
    %2916 = vmatprep.subr.mxu0 0.0
    %2917 = vmatpush1.msra.mxu0 %v2509
    %2918 = vmatprep.subr.mxu0 0.0
    %2919 = vmatpush1.msra.mxu0 %v2508
    %2920 = vmatprep.subr.mxu0 0.0
    %2921 = vmatpush1.msra.mxu0 %v2507
    %2922 = vmatprep.subr.mxu0 0.0
    %2923 = vmatpush1.msra.mxu0 %v2506
    %2924 = vmatprep.subr.mxu0 0.0
    %2925 = vmatpush2.msra.mxu0 %v2537
    %2926 = vmatprep.subr.mxu0 0.0
    %2927 = vmatpush2.msra.mxu0 %v2536
    %2928 = vmatprep.subr.mxu0 0.0
    %2929 = vmatpush2.msra.mxu0 %v2535
    %2930 = vmatprep.subr.mxu0 0.0
    %2931 = vmatpush2.msra.mxu0 %v2534
    %2932 = vmatprep.subr.mxu0 0.0
    %2933 = vmatpush2.msra.mxu0 %v2533
    %2934 = vmatprep.subr.mxu0 0.0
    %2935 = vmatpush2.msra.mxu0 %v2532
    %2936 = vmatprep.subr.mxu0 0.0
    %2937 = vmatpush2.msra.mxu0 %v2531
    %2938 = vmatprep.subr.mxu0 0.0
    %2939 = vmatpush2.msra.mxu0 %v2530
    %2940 = vmatprep.subr.mxu0 0.0
    %2941 = vmatpush2.msra.mxu0 %v2529
    %2942 = vmatprep.subr.mxu0 0.0
    %2943 = vmatpush2.msra.mxu0 %v2528
    %2944 = vmatprep.subr.mxu0 0.0
    %2945 = vmatpush2.msra.mxu0 %v2527
    %2946 = vmatprep.subr.mxu0 0.0
    %2947 = vmatpush2.msra.mxu0 %v2526
    %2948 = vmatprep.subr.mxu0 0.0
    %2949 = vmatpush2.msra.mxu0 %v2525
    %2950 = vmatprep.subr.mxu0 0.0
    %2951 = vmatpush2.msra.mxu0 %v2524
    %2952 = vmatprep.subr.mxu0 0.0
    %2953 = vmatpush2.msra.mxu0 %v2523
    %2954 = vmatprep.subr.mxu0 0.0
    %2955 = vmatpush2.msra.mxu0 %v2522
    %2956 = vmatprep.mubr.f32.mxu0 %v2673
    %2957 = vmatmul.mubr.f32.gmra.mxu0 %v2672
    %v2958 = vpop.f32.mrf.mxu0
    %v2959 = vadd.f32 %v2889, %v2958
    %v2960 = vpop.f32.mrf.mxu0
    %2961 = vdwg.mxu0
    %2962 = vmatprep.subr.mxu0 0.0
    %2963 = vmatpush1.msra.mxu0 %v2553
    %2964 = vmatprep.subr.mxu0 0.0
    %2965 = vmatpush1.msra.mxu0 %v2552
    %2966 = vmatprep.subr.mxu0 0.0
    %2967 = vmatpush1.msra.mxu0 %v2551
    %2968 = vmatprep.subr.mxu0 0.0
    %2969 = vmatpush1.msra.mxu0 %v2550
    %2970 = vmatprep.subr.mxu0 0.0
    %2971 = vmatpush1.msra.mxu0 %v2549
    %2972 = vmatprep.subr.mxu0 0.0
    %2973 = vmatpush1.msra.mxu0 %v2548
    %2974 = vmatprep.subr.mxu0 0.0
    %2975 = vmatpush1.msra.mxu0 %v2547
    %2976 = vmatprep.subr.mxu0 0.0
    %2977 = vmatpush1.msra.mxu0 %v2546
    %2978 = vmatprep.subr.mxu0 0.0
    %2979 = vmatpush1.msra.mxu0 %v2545
    %2980 = vmatprep.subr.mxu0 0.0
    %2981 = vmatpush1.msra.mxu0 %v2544
    %2982 = vmatprep.subr.mxu0 0.0
    %2983 = vmatpush1.msra.mxu0 %v2543
    %2984 = vmatprep.subr.mxu0 0.0
    %2985 = vmatpush1.msra.mxu0 %v2542
    %2986 = vmatprep.subr.mxu0 0.0
    %2987 = vmatpush1.msra.mxu0 %v2541
    %2988 = vmatprep.subr.mxu0 0.0
    %2989 = vmatpush1.msra.mxu0 %v2540
    %2990 = vmatprep.subr.mxu0 0.0
    %2991 = vmatpush1.msra.mxu0 %v2539
    %2992 = vmatprep.subr.mxu0 0.0
    %2993 = vmatpush1.msra.mxu0 %v2538
    %2994 = vmatprep.subr.mxu0 0.0
    %2995 = vmatpush2.msra.mxu0 %v2569
    %2996 = vmatprep.subr.mxu0 0.0
    %2997 = vmatpush2.msra.mxu0 %v2568
    %2998 = vmatprep.subr.mxu0 0.0
    %2999 = vmatpush2.msra.mxu0 %v2567
    %3000 = vmatprep.subr.mxu0 0.0
    %3001 = vmatpush2.msra.mxu0 %v2566
    %3002 = vmatprep.subr.mxu0 0.0
    %3003 = vmatpush2.msra.mxu0 %v2565
    %3004 = vmatprep.subr.mxu0 0.0
    %3005 = vmatpush2.msra.mxu0 %v2564
    %3006 = vmatprep.subr.mxu0 0.0
    %3007 = vmatpush2.msra.mxu0 %v2563
    %3008 = vmatprep.subr.mxu0 0.0
    %3009 = vmatpush2.msra.mxu0 %v2562
    %3010 = vmatprep.subr.mxu0 0.0
    %3011 = vmatpush2.msra.mxu0 %v2561
    %3012 = vmatprep.subr.mxu0 0.0
    %3013 = vmatpush2.msra.mxu0 %v2560
    %3014 = vmatprep.subr.mxu0 0.0
    %3015 = vmatpush2.msra.mxu0 %v2559
    %3016 = vmatprep.subr.mxu0 0.0
    %3017 = vmatpush2.msra.mxu0 %v2558
    %3018 = vmatprep.subr.mxu0 0.0
    %3019 = vmatpush2.msra.mxu0 %v2557
    %3020 = vmatprep.subr.mxu0 0.0
    %3021 = vmatpush2.msra.mxu0 %v2556
    %3022 = vmatprep.subr.mxu0 0.0
    %3023 = vmatpush2.msra.mxu0 %v2555
    %3024 = vmatprep.subr.mxu0 0.0
    %3025 = vmatpush2.msra.mxu0 %v2554
    %3026 = vmatprep.mubr.f32.mxu0 %v2675
    %3027 = vmatmul.mubr.f32.gmra.mxu0 %v2674
    %v3028 = vpop.f32.mrf.mxu0
    %v3029 = vadd.f32 %v2959, %v3028
    %v3030 = vpop.f32.mrf.mxu0
    %3031 = vdwg.mxu0
    %3032 = vmatprep.subr.mxu0 0.0
    %3033 = vmatpush1.msra.mxu0 %v2585
    %3034 = vmatprep.subr.mxu0 0.0
    %3035 = vmatpush1.msra.mxu0 %v2584
    %3036 = vmatprep.subr.mxu0 0.0
    %3037 = vmatpush1.msra.mxu0 %v2583
    %3038 = vmatprep.subr.mxu0 0.0
    %3039 = vmatpush1.msra.mxu0 %v2582
    %3040 = vmatprep.subr.mxu0 0.0
    %3041 = vmatpush1.msra.mxu0 %v2581
    %3042 = vmatprep.subr.mxu0 0.0
    %3043 = vmatpush1.msra.mxu0 %v2580
    %3044 = vmatprep.subr.mxu0 0.0
    %3045 = vmatpush1.msra.mxu0 %v2579
    %3046 = vmatprep.subr.mxu0 0.0
    %3047 = vmatpush1.msra.mxu0 %v2578
    %3048 = vmatprep.subr.mxu0 0.0
    %3049 = vmatpush1.msra.mxu0 %v2577
    %3050 = vmatprep.subr.mxu0 0.0
    %3051 = vmatpush1.msra.mxu0 %v2576
    %3052 = vmatprep.subr.mxu0 0.0
    %3053 = vmatpush1.msra.mxu0 %v2575
    %3054 = vmatprep.subr.mxu0 0.0
    %3055 = vmatpush1.msra.mxu0 %v2574
    %3056 = vmatprep.subr.mxu0 0.0
    %3057 = vmatpush1.msra.mxu0 %v2573
    %3058 = vmatprep.subr.mxu0 0.0
    %3059 = vmatpush1.msra.mxu0 %v2572
    %3060 = vmatprep.subr.mxu0 0.0
    %3061 = vmatpush1.msra.mxu0 %v2571
    %3062 = vmatprep.subr.mxu0 0.0
    %3063 = vmatpush1.msra.mxu0 %v2570
    %3064 = vmatprep.subr.mxu0 0.0
    %3065 = vmatpush2.msra.mxu0 %v2601
    %3066 = vmatprep.subr.mxu0 0.0
    %3067 = vmatpush2.msra.mxu0 %v2600
    %3068 = vmatprep.subr.mxu0 0.0
    %3069 = vmatpush2.msra.mxu0 %v2599
    %3070 = vmatprep.subr.mxu0 0.0
    %3071 = vmatpush2.msra.mxu0 %v2598
    %3072 = vmatprep.subr.mxu0 0.0
    %3073 = vmatpush2.msra.mxu0 %v2597
    %3074 = vmatprep.subr.mxu0 0.0
    %3075 = vmatpush2.msra.mxu0 %v2596
    %3076 = vmatprep.subr.mxu0 0.0
    %3077 = vmatpush2.msra.mxu0 %v2595
    %3078 = vmatprep.subr.mxu0 0.0
    %3079 = vmatpush2.msra.mxu0 %v2594
    %3080 = vmatprep.subr.mxu0 0.0
    %3081 = vmatpush2.msra.mxu0 %v2593
    %3082 = vmatprep.subr.mxu0 0.0
    %3083 = vmatpush2.msra.mxu0 %v2592
    %3084 = vmatprep.subr.mxu0 0.0
    %3085 = vmatpush2.msra.mxu0 %v2591
    %3086 = vmatprep.subr.mxu0 0.0
    %3087 = vmatpush2.msra.mxu0 %v2590
    %3088 = vmatprep.subr.mxu0 0.0
    %3089 = vmatpush2.msra.mxu0 %v2589
    %3090 = vmatprep.subr.mxu0 0.0
    %3091 = vmatpush2.msra.mxu0 %v2588
    %3092 = vmatprep.subr.mxu0 0.0
    %3093 = vmatpush2.msra.mxu0 %v2587
    %3094 = vmatprep.subr.mxu0 0.0
    %3095 = vmatpush2.msra.mxu0 %v2586
    %3096 = vmatprep.mubr.f32.mxu0 %v2677
    %3097 = vmatmul.mubr.f32.gmra.mxu0 %v2676
    %v3098 = vpop.f32.mrf.mxu0
    %v3099 = vadd.f32 %v3029, %v3098
    %v3100 = vpop.f32.mrf.mxu0
    %3101 = vdwg.mxu0
    %3102 = vmatprep.subr.mxu0 0.0
    %3103 = vmatpush1.msra.mxu0 %v2617
    %3104 = vmatprep.subr.mxu0 0.0
    %3105 = vmatpush1.msra.mxu0 %v2616
    %3106 = vmatprep.subr.mxu0 0.0
    %3107 = vmatpush1.msra.mxu0 %v2615
    %3108 = vmatprep.subr.mxu0 0.0
    %3109 = vmatpush1.msra.mxu0 %v2614
    %3110 = vmatprep.subr.mxu0 0.0
    %3111 = vmatpush1.msra.mxu0 %v2613
    %3112 = vmatprep.subr.mxu0 0.0
    %3113 = vmatpush1.msra.mxu0 %v2612
    %3114 = vmatprep.subr.mxu0 0.0
    %3115 = vmatpush1.msra.mxu0 %v2611
    %3116 = vmatprep.subr.mxu0 0.0
    %3117 = vmatpush1.msra.mxu0 %v2610
    %3118 = vmatprep.subr.mxu0 0.0
    %3119 = vmatpush1.msra.mxu0 %v2609
    %3120 = vmatprep.subr.mxu0 0.0
    %3121 = vmatpush1.msra.mxu0 %v2608
    %3122 = vmatprep.subr.mxu0 0.0
    %3123 = vmatpush1.msra.mxu0 %v2607
    %3124 = vmatprep.subr.mxu0 0.0
    %3125 = vmatpush1.msra.mxu0 %v2606
    %3126 = vmatprep.subr.mxu0 0.0
    %3127 = vmatpush1.msra.mxu0 %v2605
    %3128 = vmatprep.subr.mxu0 0.0
    %3129 = vmatpush1.msra.mxu0 %v2604
    %3130 = vmatprep.subr.mxu0 0.0
    %3131 = vmatpush1.msra.mxu0 %v2603
    %3132 = vmatprep.subr.mxu0 0.0
    %3133 = vmatpush1.msra.mxu0 %v2602
    %3134 = vmatprep.subr.mxu0 0.0
    %3135 = vmatpush2.msra.mxu0 %v2633
    %3136 = vmatprep.subr.mxu0 0.0
    %3137 = vmatpush2.msra.mxu0 %v2632
    %3138 = vmatprep.subr.mxu0 0.0
    %3139 = vmatpush2.msra.mxu0 %v2631
    %3140 = vmatprep.subr.mxu0 0.0
    %3141 = vmatpush2.msra.mxu0 %v2630
    %3142 = vmatprep.subr.mxu0 0.0
    %3143 = vmatpush2.msra.mxu0 %v2629
    %3144 = vmatprep.subr.mxu0 0.0
    %3145 = vmatpush2.msra.mxu0 %v2628
    %3146 = vmatprep.subr.mxu0 0.0
    %3147 = vmatpush2.msra.mxu0 %v2627
    %3148 = vmatprep.subr.mxu0 0.0
    %3149 = vmatpush2.msra.mxu0 %v2626
    %3150 = vmatprep.subr.mxu0 0.0
    %3151 = vmatpush2.msra.mxu0 %v2625
    %3152 = vmatprep.subr.mxu0 0.0
    %3153 = vmatpush2.msra.mxu0 %v2624
    %3154 = vmatprep.subr.mxu0 0.0
    %3155 = vmatpush2.msra.mxu0 %v2623
    %3156 = vmatprep.subr.mxu0 0.0
    %3157 = vmatpush2.msra.mxu0 %v2622
    %3158 = vmatprep.subr.mxu0 0.0
    %3159 = vmatpush2.msra.mxu0 %v2621
    %3160 = vmatprep.subr.mxu0 0.0
    %3161 = vmatpush2.msra.mxu0 %v2620
    %3162 = vmatprep.subr.mxu0 0.0
    %3163 = vmatpush2.msra.mxu0 %v2619
    %3164 = vmatprep.subr.mxu0 0.0
    %3165 = vmatpush2.msra.mxu0 %v2618
    %3166 = vmatprep.mubr.f32.mxu0 %v2679
    %3167 = vmatmul.mubr.f32.gmra.mxu0 %v2678
    %v3168 = vpop.f32.mrf.mxu0
    %v3169 = vadd.f32 %v3099, %v3168
    %v3170 = vpop.f32.mrf.mxu0
    %3171 = vdwg.mxu0
    %3172 = vmatprep.subr.mxu0 0.0
    %3173 = vmatpush1.msra.mxu0 %v2649
    %3174 = vmatprep.subr.mxu0 0.0
    %3175 = vmatpush1.msra.mxu0 %v2648
    %3176 = vmatprep.subr.mxu0 0.0
    %3177 = vmatpush1.msra.mxu0 %v2647
    %3178 = vmatprep.subr.mxu0 0.0
    %3179 = vmatpush1.msra.mxu0 %v2646
    %3180 = vmatprep.subr.mxu0 0.0
    %3181 = vmatpush1.msra.mxu0 %v2645
    %3182 = vmatprep.subr.mxu0 0.0
    %3183 = vmatpush1.msra.mxu0 %v2644
    %3184 = vmatprep.subr.mxu0 0.0
    %3185 = vmatpush1.msra.mxu0 %v2643
    %3186 = vmatprep.subr.mxu0 0.0
    %3187 = vmatpush1.msra.mxu0 %v2642
    %3188 = vmatprep.subr.mxu0 0.0
    %3189 = vmatpush1.msra.mxu0 %v2641
    %3190 = vmatprep.subr.mxu0 0.0
    %3191 = vmatpush1.msra.mxu0 %v2640
    %3192 = vmatprep.subr.mxu0 0.0
    %3193 = vmatpush1.msra.mxu0 %v2639
    %3194 = vmatprep.subr.mxu0 0.0
    %3195 = vmatpush1.msra.mxu0 %v2638
    %3196 = vmatprep.subr.mxu0 0.0
    %3197 = vmatpush1.msra.mxu0 %v2637
    %3198 = vmatprep.subr.mxu0 0.0
    %3199 = vmatpush1.msra.mxu0 %v2636
    %3200 = vmatprep.subr.mxu0 0.0
    %3201 = vmatpush1.msra.mxu0 %v2635
    %3202 = vmatprep.subr.mxu0 0.0
    %3203 = vmatpush1.msra.mxu0 %v2634
    %3204 = vmatprep.subr.mxu0 0.0
    %3205 = vmatpush2.msra.mxu0 %v2665
    %3206 = vmatprep.subr.mxu0 0.0
    %3207 = vmatpush2.msra.mxu0 %v2664
    %3208 = vmatprep.subr.mxu0 0.0
    %3209 = vmatpush2.msra.mxu0 %v2663
    %3210 = vmatprep.subr.mxu0 0.0
    %3211 = vmatpush2.msra.mxu0 %v2662
    %3212 = vmatprep.subr.mxu0 0.0
    %3213 = vmatpush2.msra.mxu0 %v2661
    %3214 = vmatprep.subr.mxu0 0.0
    %3215 = vmatpush2.msra.mxu0 %v2660
    %3216 = vmatprep.subr.mxu0 0.0
    %3217 = vmatpush2.msra.mxu0 %v2659
    %3218 = vmatprep.subr.mxu0 0.0
    %3219 = vmatpush2.msra.mxu0 %v2658
    %3220 = vmatprep.subr.mxu0 0.0
    %3221 = vmatpush2.msra.mxu0 %v2657
    %3222 = vmatprep.subr.mxu0 0.0
    %3223 = vmatpush2.msra.mxu0 %v2656
    %3224 = vmatprep.subr.mxu0 0.0
    %3225 = vmatpush2.msra.mxu0 %v2655
    %3226 = vmatprep.subr.mxu0 0.0
    %3227 = vmatpush2.msra.mxu0 %v2654
    %3228 = vmatprep.subr.mxu0 0.0
    %3229 = vmatpush2.msra.mxu0 %v2653
    %3230 = vmatprep.subr.mxu0 0.0
    %3231 = vmatpush2.msra.mxu0 %v2652
    %3232 = vmatprep.subr.mxu0 0.0
    %3233 = vmatpush2.msra.mxu0 %v2651
    %3234 = vmatprep.subr.mxu0 0.0
    %3235 = vmatpush2.msra.mxu0 %v2650
    %3236 = vmatprep.mubr.f32.mxu0 %v2681
    %3237 = vmatmul.mubr.f32.gmra.mxu0 %v2680
    %v3238 = vpop.f32.mrf.mxu0
    %v3239 = vadd.f32 %v3169, %v3238
    %v3240 = vpop.f32.mrf.mxu0
    %3241 = vdwg.mxu0
    %v3242 = vld [vmem:[%s4] sm:$0xff]
    %v3243 = vld [vmem:[%s4 + $0x8] sm:$0xff]
    %v3244 = vld [vmem:[%s4 + $0x10] sm:$0xff]
    %v3245 = vld [vmem:[%s4 + $0x18] sm:$0xff]
    %v3246 = vld [vmem:[%s4 + $0x20] sm:$0xff]
    %v3247 = vld [vmem:[%s4 + $0x28] sm:$0xff]
    %v3248 = vld [vmem:[%s4 + $0x30] sm:$0xff]
    %v3249 = vld [vmem:[%s4 + $0x38] sm:$0xff]
    %v3250 = vld [vmem:[%s4 + $0x40] sm:$0xff]
    %v3251 = vld [vmem:[%s4 + $0x48] sm:$0xff]
    %v3252 = vld [vmem:[%s4 + $0x50] sm:$0xff]
    %v3253 = vld [vmem:[%s4 + $0x58] sm:$0xff]
    %v3254 = vld [vmem:[%s4 + $0x60] sm:$0xff]
    %v3255 = vld [vmem:[%s4 + $0x68] sm:$0xff]
    %v3256 = vld [vmem:[%s4 + $0x70] sm:$0xff]
    %v3257 = vld [vmem:[%s4 + $0x78] sm:$0xff]
    %v3258 = vld [vmem:[%s5] sm:$0x1]
    %v3260 = vlaneseq
    %v3261 = vshrl.u32 %v3260, 7
    %v3262 = vsub.s32 0, %v3261
    %v3263 = vrot.slane %v3258, %v3262
    %3265 = vmatprep.subr.mxu0 0.0
    %3266 = vmatpush1.msra.mxu0 %v3257
    %3267 = vmatprep.subr.mxu0 0.0
    %3268 = vmatpush1.msra.mxu0 %v3256
    %3269 = vmatprep.subr.mxu0 0.0
    %3270 = vmatpush1.msra.mxu0 %v3255
    %3271 = vmatprep.subr.mxu0 0.0
    %3272 = vmatpush1.msra.mxu0 %v3254
    %3273 = vmatprep.subr.mxu0 0.0
    %3274 = vmatpush1.msra.mxu0 %v3253
    %3275 = vmatprep.subr.mxu0 0.0
    %3276 = vmatpush1.msra.mxu0 %v3252
    %3277 = vmatprep.subr.mxu0 0.0
    %3278 = vmatpush1.msra.mxu0 %v3251
    %3279 = vmatprep.subr.mxu0 0.0
    %3280 = vmatpush1.msra.mxu0 %v3250
    %3281 = vmatprep.subr.mxu0 0.0
    %3282 = vmatpush1.msra.mxu0 %v3249
    %3283 = vmatprep.subr.mxu0 0.0
    %3284 = vmatpush1.msra.mxu0 %v3248
    %3285 = vmatprep.subr.mxu0 0.0
    %3286 = vmatpush1.msra.mxu0 %v3247
    %3287 = vmatprep.subr.mxu0 0.0
    %3288 = vmatpush1.msra.mxu0 %v3246
    %3289 = vmatprep.subr.mxu0 0.0
    %3290 = vmatpush1.msra.mxu0 %v3245
    %3291 = vmatprep.subr.mxu0 0.0
    %3292 = vmatpush1.msra.mxu0 %v3244
    %3293 = vmatprep.subr.mxu0 0.0
    %3294 = vmatpush1.msra.mxu0 %v3243
    %3295 = vmatprep.subr.mxu0 0.0
    %3296 = vmatpush1.msra.mxu0 %v3242
    %3297 = vmatprep.subr.mxu0 0.0
    %3298 = vmatpush2.msra.mxu0 0.0
    %3299 = vmatprep.subr.mxu0 0.0
    %3300 = vmatpush2.msra.mxu0 0.0
    %3301 = vmatprep.subr.mxu0 0.0
    %3302 = vmatpush2.msra.mxu0 0.0
    %3303 = vmatprep.subr.mxu0 0.0
    %3304 = vmatpush2.msra.mxu0 0.0
    %3305 = vmatprep.subr.mxu0 0.0
    %3306 = vmatpush2.msra.mxu0 0.0
    %3307 = vmatprep.subr.mxu0 0.0
    %3308 = vmatpush2.msra.mxu0 0.0
    %3309 = vmatprep.subr.mxu0 0.0
    %3310 = vmatpush2.msra.mxu0 0.0
    %3311 = vmatprep.subr.mxu0 0.0
    %3312 = vmatpush2.msra.mxu0 0.0
    %3313 = vmatprep.subr.mxu0 0.0
    %3314 = vmatpush2.msra.mxu0 0.0
    %3315 = vmatprep.subr.mxu0 0.0
    %3316 = vmatpush2.msra.mxu0 0.0
    %3317 = vmatprep.subr.mxu0 0.0
    %3318 = vmatpush2.msra.mxu0 0.0
    %3319 = vmatprep.subr.mxu0 0.0
    %3320 = vmatpush2.msra.mxu0 0.0
    %3321 = vmatprep.subr.mxu0 0.0
    %3322 = vmatpush2.msra.mxu0 0.0
    %3323 = vmatprep.subr.mxu0 0.0
    %3324 = vmatpush2.msra.mxu0 0.0
    %3325 = vmatprep.subr.mxu0 0.0
    %3326 = vmatpush2.msra.mxu0 0.0
    %3327 = vmatprep.subr.mxu0 0.0
    %3328 = vmatpush2.msra.mxu0 0.0
    %3329 = vmatprep.mubr.f32.mxu0 0.0
    %3330 = vmatmul.mubr.f32.gmra.mxu0 %v3239
    %v3331 = vpop.f32.mrf.mxu0
    %v3332 = vadd.f32 %v3263, %v3331
    %v3333 = vpop.f32.mrf.mxu0
    %3334 = vdwg.mxu0
    %3335 = vst [vmem:[#allocation2] sm:$0xff] %v3332
    // Predicated region
    $region26: #{tpu_custom_call.1} parent=1 // pred_check
      _
    $region27: #{tpu_custom_call.1} parent=1 // pred_check_branch
      %3337 = sbr.rel (0) target = $region29
    $region28: #{tpu_custom_call.1} parent=1 // pred_region
      %s3339 = ssub.s32 128, 128
      %3340 = vsyncadd [#allocation3], %s3339
      %s3342 = sshll.u32 [#allocation2], 4
      %s3343 = int_to_ptr.vmem [resolvable:$true] %s3342
      %3345 = dma.vmem_to_hbm [thread:$0]  %s3343, 128, %s6, [#allocation3]
    $region29: #{tpu_custom_call.1} parent=1 // pred_fallthru
      _
    // Predicated region
    $region30: #{tpu_custom_call.1} parent=1 // pred_check
      _
    $region31: #{tpu_custom_call.1} parent=1 // pred_check_branch
      %3347 = sbr.rel (0) target = $region33
    $region32: #{tpu_custom_call.1} parent=1 // pred_region
      %3348 = dma.done [#allocation3], 128
    $region33: #{tpu_custom_call.1} parent=1 // pred_fallthru
      _
    %3349 = vsyncpa [#allocation3], 1

</llo_original>
